<compile_context>
chip_gen: v6e
topology: v6e:2x2x1
jax: 0.10.0
libtpu: 0.0.40
codegen_flags: <defaults>
</compile_context>

<pallas_src>
import math

import jax
import jax.numpy as jnp
from jax import lax
from jax.experimental import pallas as pl
from jax.experimental.pallas import tpu as pltpu  # noqa: F401  (no TPU-specific params needed at this size)

LN_EPS = 1e-5
_GELU_C = 0.7978845608028654  # sqrt(2/pi)


def _layer_norm(h, gamma, beta):
    mu = jnp.mean(h, axis=-1, keepdims=True)
    c = h - mu
    var = jnp.mean(c * c, axis=-1, keepdims=True)
    return c * lax.rsqrt(var + LN_EPS) * gamma + beta


def _gelu_tanh(x):
    # TODO(synk): PyTorch nn.GELU() default is the exact erf form; the tanh
    # approximation is used because erf has no guaranteed Mosaic lowering
    # (difference is <1e-6 at these activation scales).
    return 0.5 * x * (1.0 + jnp.tanh(_GELU_C * (x + 0.044715 * x * x * x)))


def make_block_forward(B, T, C, n_head):
    assert C % n_head == 0
    hd = C // n_head
    scale = 1.0 / math.sqrt(hd)
    BT = B * T

    def kernel(x_ref, g1_ref, b1_ref, wqkv_ref, bqkv_ref, wp_ref, bp_ref,
               g2_ref, b2_ref, wfc_ref, bfc_ref, wpr_ref, bpr_ref, o_ref):
        x = x_ref[...]                                         # (B*T, C) f32

        # ---------- LN1 + fused QKV projection (single (C,3C) MXU matmul) ----
        h = _layer_norm(x, g1_ref[...], b1_ref[...])
        qkv = jnp.dot(h, wqkv_ref[...],
                      preferred_element_type=jnp.float32) + bqkv_ref[...]
        # Split q/k/v and add the batch dim back with a leading-dim-only
        # reshape (no minor-dim relayout: (B*T, C) -> (B, T, C) keeps layout).
        q = qkv[:, 0 * C:1 * C].reshape(B, T, C)
        k = qkv[:, 1 * C:2 * C].reshape(B, T, C)
        v = qkv[:, 2 * C:3 * C].reshape(B, T, C)

        # Additive causal mask built once (2-D iota; finite -1e30, not -inf).
        row = lax.broadcasted_iota(jnp.int32, (T, T), 0)
        col = lax.broadcasted_iota(jnp.int32, (T, T), 1)
        mask_bias = jnp.where(row >= col, 0.0, -1e30).astype(jnp.float32)[None]  # (1,T,T)
        # NOTE: config has no `n_unmasked` attribute -> plain causal tril.

        wp = wp_ref[...]                                       # (C, C), (in,out)
        y_proj = jnp.zeros((BT, C), jnp.float32)

        # Per-head attention, batched over B via dot_general (no kh.T, no
        # .at[].set chains): each head's output is folded straight into the
        # output projection, so y is never materialized / lane-concatenated.
        for hh in range(n_head):
            lo = hh * hd
            qh = q[:, :, lo:lo + hd]                           # (B, T, hd)
            kh = k[:, :, lo:lo + hd]
            vh = v[:, :, lo:lo + hd]

            s = jnp.einsum('bqd,bkd->bqk', qh, kh,
                           preferred_element_type=jnp.float32) * scale
            s = s + mask_bias
            s = s - jnp.max(s, axis=-1, keepdims=True)         # stable softmax
            p = jnp.exp(s)
            p = p / jnp.sum(p, axis=-1, keepdims=True)
            # TODO(synk): attn_drop / resid_drop are identity (eval mode).

            yh = jnp.einsum('bqk,bkd->bqd', p, vh,
                            preferred_element_type=jnp.float32)  # (B, T, hd)
            y_proj = y_proj + jnp.dot(yh.reshape(BT, hd), wp[lo:lo + hd, :],
                                      preferred_element_type=jnp.float32)

        x = x + y_proj + bp_ref[...]                            # residual 1

        # ---------- LN2 + MLP (C -> 4C -> C, GELU) ----------
        h2 = _layer_norm(x, g2_ref[...], b2_ref[...])
        m = jnp.dot(h2, wfc_ref[...],
                    preferred_element_type=jnp.float32) + bfc_ref[...]
        m = _gelu_tanh(m)
        m = jnp.dot(m, wpr_ref[...],
                    preferred_element_type=jnp.float32) + bpr_ref[...]

        o_ref[...] = (x + m).astype(o_ref.dtype)                # residual 2

    # Single invocation, whole (tiny) arrays resident in VMEM: no grid.
    call = pl.pallas_call(
        kernel,
        out_shape=jax.ShapeDtypeStruct((BT, C), jnp.float32),
    )

    @jax.jit
    def forward(x, prepped):
        out = call(x.reshape(BT, C), *prepped)
        return out.reshape(B, T, C)

    return forward


def prepare_params(params):
    """One-time packing into the kernel's (in, out) layout — outside the hot path."""
    C = params['wq'].shape[0]
    w_qkv = jnp.concatenate(
        [params['wq'].T, params['wk'].T, params['wv'].T], axis=1)       # (C, 3C)
    b_qkv = jnp.concatenate(
        [params['bq'], params['bk'], params['bv']]).reshape(1, 3 * C)   # (1, 3C)
    return (
        params['ln1_g'].reshape(1, C), params['ln1_b'].reshape(1, C),
        w_qkv, b_qkv,
        params['wp'].T, params['bp'].reshape(1, C),
        params['ln2_g'].reshape(1, C), params['ln2_b'].reshape(1, C),
        params['w_fc'].T, params['b_fc'].reshape(1, 4 * C),
        params['w_out'].T, params['b_out'].reshape(1, C),
    )


def reference_block(x, params, n_head):
    """Pure-JAX mirror of the PyTorch Block forward (eval mode)."""
    B, T, C = x.shape
    hd = C // n_head

    def lnorm(h, g, b):
        mu = jnp.mean(h, axis=-1, keepdims=True)
        var = jnp.mean((h - mu) ** 2, axis=-1, keepdims=True)
        return (h - mu) / jnp.sqrt(var + LN_EPS) * g + b

    def lin(h, w, b):
        return jnp.einsum('btc,oc->bto', h, w) + b

    h = lnorm(x, params['ln1_g'], params['ln1_b'])
    q = lin(h, params['wq'], params['bq']).reshape(B, T, n_head, hd).transpose(0, 2, 1, 3)
    k = lin(h, params['wk'], params['bk']).reshape(B, T, n_head, hd).transpose(0, 2, 1, 3)
    v = lin(h, params['wv'], params['bv']).reshape(B, T, n_head, hd).transpose(0, 2, 1, 3)
    att = jnp.einsum('bhqd,bhkd->bhqk', q, k) / math.sqrt(hd)
    mask = jnp.tril(jnp.ones((T, T), bool))
    att = jnp.where(mask[None, None], att, -jnp.inf)
    att = jax.nn.softmax(att, axis=-1)
    y = jnp.einsum('bhqk,bhkd->bhqd', att, v).transpose(0, 2, 1, 3).reshape(B, T, C)
    x = x + lin(y, params['wp'], params['bp'])

    h2 = lnorm(x, params['ln2_g'], params['ln2_b'])
    m = lin(h2, params['w_fc'], params['b_fc'])
    m = jax.nn.gelu(m, approximate=True)   # same tanh approximation as the kernel
    m = lin(m, params['w_out'], params['b_out'])
    return x + m


if __name__ == "__main__":
    # config: n_embd=32, n_head=4, block_size=8 (== T); no n_unmasked attribute
    B, T, C, n_head = 2, 8, 32, 4

    key = jax.random.PRNGKey(0)
    ks = jax.random.split(key, 17)
    s = 0.02
    params = {
        "wq": s * jax.random.normal(ks[0], (C, C), jnp.float32),
        "wk": s * jax.random.normal(ks[1], (C, C), jnp.float32),
        "wv": s * jax.random.normal(ks[2], (C, C), jnp.float32),
        "wp": s * jax.random.normal(ks[3], (C, C), jnp.float32),
        "bq": s * jax.random.normal(ks[4], (C,), jnp.float32),
        "bk": s * jax.random.normal(ks[5], (C,), jnp.float32),
        "bv": s * jax.random.normal(ks[6], (C,), jnp.float32),
        "bp": s * jax.random.normal(ks[7], (C,), jnp.float32),
        "w_fc": s * jax.random.normal(ks[8], (4 * C, C), jnp.float32),
        "b_fc": s * jax.random.normal(ks[9], (4 * C,), jnp.float32),
        "w_out": s * jax.random.normal(ks[10], (C, 4 * C), jnp.float32),
        "b_out": s * jax.random.normal(ks[11], (C,), jnp.float32),
        "ln1_g": 1.0 + 0.1 * jax.random.normal(ks[12], (C,), jnp.float32),
        "ln1_b": 0.1 * jax.random.normal(ks[13], (C,), jnp.float32),
        "ln2_g": 1.0 + 0.1 * jax.random.normal(ks[14], (C,), jnp.float32),
        "ln2_b": 0.1 * jax.random.normal(ks[15], (C,), jnp.float32),
    }
    x = jax.random.normal(ks[16], (B, T, C), jnp.float32)

    prepped = prepare_params(params)          # one-time packing, not per call
    forward = make_block_forward(B, T, C, n_head)

    out = jax.block_until_ready(forward(x, prepped))

    ref = reference_block(x, params, n_head)
    assert jnp.allclose(out, ref, atol=5e-4, rtol=5e-4), "mismatch vs reference"

    print("KERNEL_OK")
</pallas_src>

<mosaic_0001>
module attributes {stable_mosaic.version = 11 : i64} {
  func.func @kernel(%arg0: memref<16x32xf32, #tpu.memory_space<vmem>>, %arg1: memref<1x32xf32, #tpu.memory_space<vmem>>, %arg2: memref<1x32xf32, #tpu.memory_space<vmem>>, %arg3: memref<32x96xf32, #tpu.memory_space<vmem>>, %arg4: memref<1x96xf32, #tpu.memory_space<vmem>>, %arg5: memref<32x32xf32, #tpu.memory_space<vmem>>, %arg6: memref<1x32xf32, #tpu.memory_space<vmem>>, %arg7: memref<1x32xf32, #tpu.memory_space<vmem>>, %arg8: memref<1x32xf32, #tpu.memory_space<vmem>>, %arg9: memref<32x128xf32, #tpu.memory_space<vmem>>, %arg10: memref<1x128xf32, #tpu.memory_space<vmem>>, %arg11: memref<128x32xf32, #tpu.memory_space<vmem>>, %arg12: memref<1x32xf32, #tpu.memory_space<vmem>>, %arg13: memref<16x32xf32, #tpu.memory_space<vmem>>) attributes {dimension_semantics = [], scalar_prefetch = 0 : i64, scratch_operands = 0 : i64, tpu.core_type = #tpu.core_type<tc>} {
    %c0 = arith.constant 0 : index
    %c0_0 = arith.constant 0 : index
    %0 = vector.load %arg0[%c0, %c0_0] : memref<16x32xf32, #tpu.memory_space<vmem>>, vector<16x32xf32>
    %c0_1 = arith.constant 0 : index
    %c0_2 = arith.constant 0 : index
    %1 = vector.load %arg1[%c0_1, %c0_2] : memref<1x32xf32, #tpu.memory_space<vmem>>, vector<1x32xf32>
    %c0_3 = arith.constant 0 : index
    %c0_4 = arith.constant 0 : index
    %2 = vector.load %arg2[%c0_3, %c0_4] : memref<1x32xf32, #tpu.memory_space<vmem>>, vector<1x32xf32>
    %cst = arith.constant dense<0.000000e+00> : vector<16xf32>
    %3 = vector.multi_reduction <add>, %0, %cst [1] : vector<16x32xf32> to vector<16xf32>
    %4 = vector.shape_cast %3 : vector<16xf32> to vector<16x1xf32>
    %cst_5 = arith.constant 3.200000e+01 : f32
    %5 = vector.broadcast %cst_5 : f32 to vector<16x1xf32>
    %6 = arith.divf %4, %5 : vector<16x1xf32>
    %7 = vector.broadcast %6 : vector<16x1xf32> to vector<16x32xf32>
    %8 = arith.subf %0, %7 : vector<16x32xf32>
    %9 = arith.mulf %8, %8 : vector<16x32xf32>
    %cst_6 = arith.constant dense<0.000000e+00> : vector<16xf32>
    %10 = vector.multi_reduction <add>, %9, %cst_6 [1] : vector<16x32xf32> to vector<16xf32>
    %11 = vector.shape_cast %10 : vector<16xf32> to vector<16x1xf32>
    %cst_7 = arith.constant 3.200000e+01 : f32
    %12 = vector.broadcast %cst_7 : f32 to vector<16x1xf32>
    %13 = arith.divf %11, %12 : vector<16x1xf32>
    %cst_8 = arith.constant 9.99999974E-6 : f32
    %14 = vector.broadcast %cst_8 : f32 to vector<16x1xf32>
    %15 = arith.addf %13, %14 : vector<16x1xf32>
    %16 = math.rsqrt %15 : vector<16x1xf32>
    %17 = vector.broadcast %16 : vector<16x1xf32> to vector<16x32xf32>
    %18 = arith.mulf %8, %17 : vector<16x32xf32>
    %19 = vector.broadcast %1 : vector<1x32xf32> to vector<16x32xf32>
    %20 = arith.mulf %18, %19 : vector<16x32xf32>
    %21 = vector.broadcast %2 : vector<1x32xf32> to vector<16x32xf32>
    %22 = arith.addf %20, %21 : vector<16x32xf32>
    %c0_9 = arith.constant 0 : index
    %c0_10 = arith.constant 0 : index
    %23 = vector.load %arg3[%c0_9, %c0_10] : memref<32x96xf32, #tpu.memory_space<vmem>>, vector<32x96xf32>
    %cst_11 = arith.constant dense<0.000000e+00> : vector<16x96xf32>
    %24 = tpu.matmul %22, %23, %cst_11 {dimension_numbers = #tpu.dot_dimension_numbers<[1], [0], [0], [1], [0, 0, 1, 1], [], []>} : vector<16x32xf32>, vector<32x96xf32>, vector<16x96xf32> -> vector<16x96xf32>
    %c0_12 = arith.constant 0 : index
    %c0_13 = arith.constant 0 : index
    %25 = vector.load %arg4[%c0_12, %c0_13] : memref<1x96xf32, #tpu.memory_space<vmem>>, vector<1x96xf32>
    %26 = vector.broadcast %25 : vector<1x96xf32> to vector<16x96xf32>
    %27 = arith.addf %24, %26 : vector<16x96xf32>
    %28 = vector.extract_strided_slice %27 {offsets = [0, 0], sizes = [16, 32], strides = [1, 1]} : vector<16x96xf32> to vector<16x32xf32>
    %29 = vector.shape_cast %28 : vector<16x32xf32> to vector<2x8x32xf32>
    %30 = vector.extract_strided_slice %27 {offsets = [0, 32], sizes = [16, 32], strides = [1, 1]} : vector<16x96xf32> to vector<16x32xf32>
    %31 = vector.shape_cast %30 : vector<16x32xf32> to vector<2x8x32xf32>
    %32 = vector.extract_strided_slice %27 {offsets = [0, 64], sizes = [16, 32], strides = [1, 1]} : vector<16x96xf32> to vector<16x32xf32>
    %33 = vector.shape_cast %32 : vector<16x32xf32> to vector<2x8x32xf32>
    %34 = tpu.iota {dimensions = array<i32: 0>} : vector<8x8xi32>
    %35 = tpu.iota {dimensions = array<i32: 1>} : vector<8x8xi32>
    %36 = arith.cmpi sge, %34, %35 : vector<8x8xi32>
    %cst_14 = arith.constant 0.000000e+00 : f32
    %cst_15 = arith.constant -1.000000e+30 : f32
    %37 = vector.broadcast %cst_14 : f32 to vector<8x8xf32>
    %38 = vector.broadcast %cst_15 : f32 to vector<8x8xf32>
    %39 = arith.select %36, %37, %38 : vector<8x8xi1>, vector<8x8xf32>
    %40 = vector.shape_cast %39 : vector<8x8xf32> to vector<1x8x8xf32>
    %c0_16 = arith.constant 0 : index
    %c0_17 = arith.constant 0 : index
    %41 = vector.load %arg5[%c0_16, %c0_17] : memref<32x32xf32, #tpu.memory_space<vmem>>, vector<32x32xf32>
    %cst_18 = arith.constant 0.000000e+00 : f32
    %42 = vector.broadcast %cst_18 : f32 to vector<16x32xf32>
    %43 = vector.extract_strided_slice %29 {offsets = [0, 0, 0], sizes = [2, 8, 8], strides = [1, 1, 1]} : vector<2x8x32xf32> to vector<2x8x8xf32>
    %44 = vector.extract_strided_slice %31 {offsets = [0, 0, 0], sizes = [2, 8, 8], strides = [1, 1, 1]} : vector<2x8x32xf32> to vector<2x8x8xf32>
    %45 = vector.extract_strided_slice %33 {offsets = [0, 0, 0], sizes = [2, 8, 8], strides = [1, 1, 1]} : vector<2x8x32xf32> to vector<2x8x8xf32>
    "tpu.trace_start"() <{level = 10 : i32, message = "bqd,bkd->bqk"}> : () -> ()
    %cst_19 = arith.constant dense<0.000000e+00> : vector<2x8x8xf32>
    %46 = tpu.matmul %43, %44, %cst_19 {dimension_numbers = #tpu.dot_dimension_numbers<[2], [2], [1], [1], [0, 0, 0, 1, 1, 1], [0], [0]>} : vector<2x8x8xf32>, vector<2x8x8xf32>, vector<2x8x8xf32> -> vector<2x8x8xf32>
    "tpu.trace_stop"() : () -> ()
    %cst_20 = arith.constant 0.353553385 : f32
    %47 = vector.broadcast %cst_20 : f32 to vector<2x8x8xf32>
    %48 = arith.mulf %46, %47 : vector<2x8x8xf32>
    %49 = vector.broadcast %40 : vector<1x8x8xf32> to vector<2x8x8xf32>
    %50 = arith.addf %48, %49 : vector<2x8x8xf32>
    %cst_21 = arith.constant dense<0xFF800000> : vector<2x8xf32>
    %51 = vector.multi_reduction <maximumf>, %50, %cst_21 [2] : vector<2x8x8xf32> to vector<2x8xf32>
    %52 = vector.shape_cast %51 : vector<2x8xf32> to vector<2x8x1xf32>
    %53 = vector.broadcast %52 : vector<2x8x1xf32> to vector<2x8x8xf32>
    %54 = arith.subf %50, %53 : vector<2x8x8xf32>
    %55 = math.exp %54 : vector<2x8x8xf32>
    %cst_22 = arith.constant dense<0.000000e+00> : vector<2x8xf32>
    %56 = vector.multi_reduction <add>, %55, %cst_22 [2] : vector<2x8x8xf32> to vector<2x8xf32>
    %57 = vector.shape_cast %56 : vector<2x8xf32> to vector<2x8x1xf32>
    %58 = vector.broadcast %57 : vector<2x8x1xf32> to vector<2x8x8xf32>
    %59 = arith.divf %55, %58 : vector<2x8x8xf32>
    "tpu.trace_start"() <{level = 10 : i32, message = "bqk,bkd->bqd"}> : () -> ()
    %cst_23 = arith.constant dense<0.000000e+00> : vector<2x8x8xf32>
    %60 = tpu.matmul %59, %45, %cst_23 {dimension_numbers = #tpu.dot_dimension_numbers<[2], [1], [1], [2], [0, 0, 0, 1, 1, 2], [0], [0]>} : vector<2x8x8xf32>, vector<2x8x8xf32>, vector<2x8x8xf32> -> vector<2x8x8xf32>
    "tpu.trace_stop"() : () -> ()
    %61 = vector.shape_cast %60 : vector<2x8x8xf32> to vector<16x8xf32>
    %62 = vector.extract_strided_slice %41 {offsets = [0, 0], sizes = [8, 32], strides = [1, 1]} : vector<32x32xf32> to vector<8x32xf32>
    %cst_24 = arith.constant dense<0.000000e+00> : vector<16x32xf32>
    %63 = tpu.matmul %61, %62, %cst_24 {dimension_numbers = #tpu.dot_dimension_numbers<[1], [0], [0], [1], [0, 0, 1, 1], [], []>} : vector<16x8xf32>, vector<8x32xf32>, vector<16x32xf32> -> vector<16x32xf32>
    %64 = arith.addf %42, %63 : vector<16x32xf32>
    %65 = vector.extract_strided_slice %29 {offsets = [0, 0, 8], sizes = [2, 8, 8], strides = [1, 1, 1]} : vector<2x8x32xf32> to vector<2x8x8xf32>
    %66 = vector.extract_strided_slice %31 {offsets = [0, 0, 8], sizes = [2, 8, 8], strides = [1, 1, 1]} : vector<2x8x32xf32> to vector<2x8x8xf32>
    %67 = vector.extract_strided_slice %33 {offsets = [0, 0, 8], sizes = [2, 8, 8], strides = [1, 1, 1]} : vector<2x8x32xf32> to vector<2x8x8xf32>
    "tpu.trace_start"() <{level = 10 : i32, message = "bqd,bkd->bqk"}> : () -> ()
    %cst_25 = arith.constant dense<0.000000e+00> : vector<2x8x8xf32>
    %68 = tpu.matmul %65, %66, %cst_25 {dimension_numbers = #tpu.dot_dimension_numbers<[2], [2], [1], [1], [0, 0, 0, 1, 1, 1], [0], [0]>} : vector<2x8x8xf32>, vector<2x8x8xf32>, vector<2x8x8xf32> -> vector<2x8x8xf32>
    "tpu.trace_stop"() : () -> ()
    %cst_26 = arith.constant 0.353553385 : f32
    %69 = vector.broadcast %cst_26 : f32 to vector<2x8x8xf32>
    %70 = arith.mulf %68, %69 : vector<2x8x8xf32>
    %71 = vector.broadcast %40 : vector<1x8x8xf32> to vector<2x8x8xf32>
    %72 = arith.addf %70, %71 : vector<2x8x8xf32>
    %cst_27 = arith.constant dense<0xFF800000> : vector<2x8xf32>
    %73 = vector.multi_reduction <maximumf>, %72, %cst_27 [2] : vector<2x8x8xf32> to vector<2x8xf32>
    %74 = vector.shape_cast %73 : vector<2x8xf32> to vector<2x8x1xf32>
    %75 = vector.broadcast %74 : vector<2x8x1xf32> to vector<2x8x8xf32>
    %76 = arith.subf %72, %75 : vector<2x8x8xf32>
    %77 = math.exp %76 : vector<2x8x8xf32>
    %cst_28 = arith.constant dense<0.000000e+00> : vector<2x8xf32>
    %78 = vector.multi_reduction <add>, %77, %cst_28 [2] : vector<2x8x8xf32> to vector<2x8xf32>
    %79 = vector.shape_cast %78 : vector<2x8xf32> to vector<2x8x1xf32>
    %80 = vector.broadcast %79 : vector<2x8x1xf32> to vector<2x8x8xf32>
    %81 = arith.divf %77, %80 : vector<2x8x8xf32>
    "tpu.trace_start"() <{level = 10 : i32, message = "bqk,bkd->bqd"}> : () -> ()
    %cst_29 = arith.constant dense<0.000000e+00> : vector<2x8x8xf32>
    %82 = tpu.matmul %81, %67, %cst_29 {dimension_numbers = #tpu.dot_dimension_numbers<[2], [1], [1], [2], [0, 0, 0, 1, 1, 2], [0], [0]>} : vector<2x8x8xf32>, vector<2x8x8xf32>, vector<2x8x8xf32> -> vector<2x8x8xf32>
    "tpu.trace_stop"() : () -> ()
    %83 = vector.shape_cast %82 : vector<2x8x8xf32> to vector<16x8xf32>
    %84 = vector.extract_strided_slice %41 {offsets = [8, 0], sizes = [8, 32], strides = [1, 1]} : vector<32x32xf32> to vector<8x32xf32>
    %cst_30 = arith.constant dense<0.000000e+00> : vector<16x32xf32>
    %85 = tpu.matmul %83, %84, %cst_30 {dimension_numbers = #tpu.dot_dimension_numbers<[1], [0], [0], [1], [0, 0, 1, 1], [], []>} : vector<16x8xf32>, vector<8x32xf32>, vector<16x32xf32> -> vector<16x32xf32>
    %86 = arith.addf %64, %85 : vector<16x32xf32>
    %87 = vector.extract_strided_slice %29 {offsets = [0, 0, 16], sizes = [2, 8, 8], strides = [1, 1, 1]} : vector<2x8x32xf32> to vector<2x8x8xf32>
    %88 = vector.extract_strided_slice %31 {offsets = [0, 0, 16], sizes = [2, 8, 8], strides = [1, 1, 1]} : vector<2x8x32xf32> to vector<2x8x8xf32>
    %89 = vector.extract_strided_slice %33 {offsets = [0, 0, 16], sizes = [2, 8, 8], strides = [1, 1, 1]} : vector<2x8x32xf32> to vector<2x8x8xf32>
    "tpu.trace_start"() <{level = 10 : i32, message = "bqd,bkd->bqk"}> : () -> ()
    %cst_31 = arith.constant dense<0.000000e+00> : vector<2x8x8xf32>
    %90 = tpu.matmul %87, %88, %cst_31 {dimension_numbers = #tpu.dot_dimension_numbers<[2], [2], [1], [1], [0, 0, 0, 1, 1, 1], [0], [0]>} : vector<2x8x8xf32>, vector<2x8x8xf32>, vector<2x8x8xf32> -> vector<2x8x8xf32>
    "tpu.trace_stop"() : () -> ()
    %cst_32 = arith.constant 0.353553385 : f32
    %91 = vector.broadcast %cst_32 : f32 to vector<2x8x8xf32>
    %92 = arith.mulf %90, %91 : vector<2x8x8xf32>
    %93 = vector.broadcast %40 : vector<1x8x8xf32> to vector<2x8x8xf32>
    %94 = arith.addf %92, %93 : vector<2x8x8xf32>
    %cst_33 = arith.constant dense<0xFF800000> : vector<2x8xf32>
    %95 = vector.multi_reduction <maximumf>, %94, %cst_33 [2] : vector<2x8x8xf32> to vector<2x8xf32>
    %96 = vector.shape_cast %95 : vector<2x8xf32> to vector<2x8x1xf32>
    %97 = vector.broadcast %96 : vector<2x8x1xf32> to vector<2x8x8xf32>
    %98 = arith.subf %94, %97 : vector<2x8x8xf32>
    %99 = math.exp %98 : vector<2x8x8xf32>
    %cst_34 = arith.constant dense<0.000000e+00> : vector<2x8xf32>
    %100 = vector.multi_reduction <add>, %99, %cst_34 [2] : vector<2x8x8xf32> to vector<2x8xf32>
    %101 = vector.shape_cast %100 : vector<2x8xf32> to vector<2x8x1xf32>
    %102 = vector.broadcast %101 : vector<2x8x1xf32> to vector<2x8x8xf32>
    %103 = arith.divf %99, %102 : vector<2x8x8xf32>
    "tpu.trace_start"() <{level = 10 : i32, message = "bqk,bkd->bqd"}> : () -> ()
    %cst_35 = arith.constant dense<0.000000e+00> : vector<2x8x8xf32>
    %104 = tpu.matmul %103, %89, %cst_35 {dimension_numbers = #tpu.dot_dimension_numbers<[2], [1], [1], [2], [0, 0, 0, 1, 1, 2], [0], [0]>} : vector<2x8x8xf32>, vector<2x8x8xf32>, vector<2x8x8xf32> -> vector<2x8x8xf32>
    "tpu.trace_stop"() : () -> ()
    %105 = vector.shape_cast %104 : vector<2x8x8xf32> to vector<16x8xf32>
    %106 = vector.extract_strided_slice %41 {offsets = [16, 0], sizes = [8, 32], strides = [1, 1]} : vector<32x32xf32> to vector<8x32xf32>
    %cst_36 = arith.constant dense<0.000000e+00> : vector<16x32xf32>
    %107 = tpu.matmul %105, %106, %cst_36 {dimension_numbers = #tpu.dot_dimension_numbers<[1], [0], [0], [1], [0, 0, 1, 1], [], []>} : vector<16x8xf32>, vector<8x32xf32>, vector<16x32xf32> -> vector<16x32xf32>
    %108 = arith.addf %86, %107 : vector<16x32xf32>
    %109 = vector.extract_strided_slice %29 {offsets = [0, 0, 24], sizes = [2, 8, 8], strides = [1, 1, 1]} : vector<2x8x32xf32> to vector<2x8x8xf32>
    %110 = vector.extract_strided_slice %31 {offsets = [0, 0, 24], sizes = [2, 8, 8], strides = [1, 1, 1]} : vector<2x8x32xf32> to vector<2x8x8xf32>
    %111 = vector.extract_strided_slice %33 {offsets = [0, 0, 24], sizes = [2, 8, 8], strides = [1, 1, 1]} : vector<2x8x32xf32> to vector<2x8x8xf32>
    "tpu.trace_start"() <{level = 10 : i32, message = "bqd,bkd->bqk"}> : () -> ()
    %cst_37 = arith.constant dense<0.000000e+00> : vector<2x8x8xf32>
    %112 = tpu.matmul %109, %110, %cst_37 {dimension_numbers = #tpu.dot_dimension_numbers<[2], [2], [1], [1], [0, 0, 0, 1, 1, 1], [0], [0]>} : vector<2x8x8xf32>, vector<2x8x8xf32>, vector<2x8x8xf32> -> vector<2x8x8xf32>
    "tpu.trace_stop"() : () -> ()
    %cst_38 = arith.constant 0.353553385 : f32
    %113 = vector.broadcast %cst_38 : f32 to vector<2x8x8xf32>
    %114 = arith.mulf %112, %113 : vector<2x8x8xf32>
    %115 = vector.broadcast %40 : vector<1x8x8xf32> to vector<2x8x8xf32>
    %116 = arith.addf %114, %115 : vector<2x8x8xf32>
    %cst_39 = arith.constant dense<0xFF800000> : vector<2x8xf32>
    %117 = vector.multi_reduction <maximumf>, %116, %cst_39 [2] : vector<2x8x8xf32> to vector<2x8xf32>
    %118 = vector.shape_cast %117 : vector<2x8xf32> to vector<2x8x1xf32>
    %119 = vector.broadcast %118 : vector<2x8x1xf32> to vector<2x8x8xf32>
    %120 = arith.subf %116, %119 : vector<2x8x8xf32>
    %121 = math.exp %120 : vector<2x8x8xf32>
    %cst_40 = arith.constant dense<0.000000e+00> : vector<2x8xf32>
    %122 = vector.multi_reduction <add>, %121, %cst_40 [2] : vector<2x8x8xf32> to vector<2x8xf32>
    %123 = vector.shape_cast %122 : vector<2x8xf32> to vector<2x8x1xf32>
    %124 = vector.broadcast %123 : vector<2x8x1xf32> to vector<2x8x8xf32>
    %125 = arith.divf %121, %124 : vector<2x8x8xf32>
    "tpu.trace_start"() <{level = 10 : i32, message = "bqk,bkd->bqd"}> : () -> ()
    %cst_41 = arith.constant dense<0.000000e+00> : vector<2x8x8xf32>
    %126 = tpu.matmul %125, %111, %cst_41 {dimension_numbers = #tpu.dot_dimension_numbers<[2], [1], [1], [2], [0, 0, 0, 1, 1, 2], [0], [0]>} : vector<2x8x8xf32>, vector<2x8x8xf32>, vector<2x8x8xf32> -> vector<2x8x8xf32>
    "tpu.trace_stop"() : () -> ()
    %127 = vector.shape_cast %126 : vector<2x8x8xf32> to vector<16x8xf32>
    %128 = vector.extract_strided_slice %41 {offsets = [24, 0], sizes = [8, 32], strides = [1, 1]} : vector<32x32xf32> to vector<8x32xf32>
    %cst_42 = arith.constant dense<0.000000e+00> : vector<16x32xf32>
    %129 = tpu.matmul %127, %128, %cst_42 {dimension_numbers = #tpu.dot_dimension_numbers<[1], [0], [0], [1], [0, 0, 1, 1], [], []>} : vector<16x8xf32>, vector<8x32xf32>, vector<16x32xf32> -> vector<16x32xf32>
    %130 = arith.addf %108, %129 : vector<16x32xf32>
    %131 = arith.addf %0, %130 : vector<16x32xf32>
    %c0_43 = arith.constant 0 : index
    %c0_44 = arith.constant 0 : index
    %132 = vector.load %arg6[%c0_43, %c0_44] : memref<1x32xf32, #tpu.memory_space<vmem>>, vector<1x32xf32>
    %133 = vector.broadcast %132 : vector<1x32xf32> to vector<16x32xf32>
    %134 = arith.addf %131, %133 : vector<16x32xf32>
    %c0_45 = arith.constant 0 : index
    %c0_46 = arith.constant 0 : index
    %135 = vector.load %arg7[%c0_45, %c0_46] : memref<1x32xf32, #tpu.memory_space<vmem>>, vector<1x32xf32>
    %c0_47 = arith.constant 0 : index
    %c0_48 = arith.constant 0 : index
    %136 = vector.load %arg8[%c0_47, %c0_48] : memref<1x32xf32, #tpu.memory_space<vmem>>, vector<1x32xf32>
    %cst_49 = arith.constant dense<0.000000e+00> : vector<16xf32>
    %137 = vector.multi_reduction <add>, %134, %cst_49 [1] : vector<16x32xf32> to vector<16xf32>
    %138 = vector.shape_cast %137 : vector<16xf32> to vector<16x1xf32>
    %cst_50 = arith.constant 3.200000e+01 : f32
    %139 = vector.broadcast %cst_50 : f32 to vector<16x1xf32>
    %140 = arith.divf %138, %139 : vector<16x1xf32>
    %141 = vector.broadcast %140 : vector<16x1xf32> to vector<16x32xf32>
    %142 = arith.subf %134, %141 : vector<16x32xf32>
    %143 = arith.mulf %142, %142 : vector<16x32xf32>
    %cst_51 = arith.constant dense<0.000000e+00> : vector<16xf32>
    %144 = vector.multi_reduction <add>, %143, %cst_51 [1] : vector<16x32xf32> to vector<16xf32>
    %145 = vector.shape_cast %144 : vector<16xf32> to vector<16x1xf32>
    %cst_52 = arith.constant 3.200000e+01 : f32
    %146 = vector.broadcast %cst_52 : f32 to vector<16x1xf32>
    %147 = arith.divf %145, %146 : vector<16x1xf32>
    %cst_53 = arith.constant 9.99999974E-6 : f32
    %148 = vector.broadcast %cst_53 : f32 to vector<16x1xf32>
    %149 = arith.addf %147, %148 : vector<16x1xf32>
    %150 = math.rsqrt %149 : vector<16x1xf32>
    %151 = vector.broadcast %150 : vector<16x1xf32> to vector<16x32xf32>
    %152 = arith.mulf %142, %151 : vector<16x32xf32>
    %153 = vector.broadcast %135 : vector<1x32xf32> to vector<16x32xf32>
    %154 = arith.mulf %152, %153 : vector<16x32xf32>
    %155 = vector.broadcast %136 : vector<1x32xf32> to vector<16x32xf32>
    %156 = arith.addf %154, %155 : vector<16x32xf32>
    %c0_54 = arith.constant 0 : index
    %c0_55 = arith.constant 0 : index
    %157 = vector.load %arg9[%c0_54, %c0_55] : memref<32x128xf32, #tpu.memory_space<vmem>>, vector<32x128xf32>
    %cst_56 = arith.constant dense<0.000000e+00> : vector<16x128xf32>
    %158 = tpu.matmul %156, %157, %cst_56 {dimension_numbers = #tpu.dot_dimension_numbers<[1], [0], [0], [1], [0, 0, 1, 1], [], []>} : vector<16x32xf32>, vector<32x128xf32>, vector<16x128xf32> -> vector<16x128xf32>
    %c0_57 = arith.constant 0 : index
    %c0_58 = arith.constant 0 : index
    %159 = vector.load %arg10[%c0_57, %c0_58] : memref<1x128xf32, #tpu.memory_space<vmem>>, vector<1x128xf32>
    %160 = vector.broadcast %159 : vector<1x128xf32> to vector<16x128xf32>
    %161 = arith.addf %158, %160 : vector<16x128xf32>
    %cst_59 = arith.constant 5.000000e-01 : f32
    %162 = vector.broadcast %cst_59 : f32 to vector<16x128xf32>
    %163 = arith.mulf %162, %161 : vector<16x128xf32>
    %cst_60 = arith.constant 4.471500e-02 : f32
    %164 = vector.broadcast %cst_60 : f32 to vector<16x128xf32>
    %165 = arith.mulf %164, %161 : vector<16x128xf32>
    %166 = arith.mulf %165, %161 : vector<16x128xf32>
    %167 = arith.mulf %166, %161 : vector<16x128xf32>
    %168 = arith.addf %161, %167 : vector<16x128xf32>
    %cst_61 = arith.constant 0.797884583 : f32
    %169 = vector.broadcast %cst_61 : f32 to vector<16x128xf32>
    %170 = arith.mulf %169, %168 : vector<16x128xf32>
    %171 = math.tanh %170 : vector<16x128xf32>
    %cst_62 = arith.constant 1.000000e+00 : f32
    %172 = vector.broadcast %cst_62 : f32 to vector<16x128xf32>
    %173 = arith.addf %172, %171 : vector<16x128xf32>
    %174 = arith.mulf %163, %173 : vector<16x128xf32>
    %c0_63 = arith.constant 0 : index
    %c0_64 = arith.constant 0 : index
    %175 = vector.load %arg11[%c0_63, %c0_64] : memref<128x32xf32, #tpu.memory_space<vmem>>, vector<128x32xf32>
    %cst_65 = arith.constant dense<0.000000e+00> : vector<16x32xf32>
    %176 = tpu.matmul %174, %175, %cst_65 {dimension_numbers = #tpu.dot_dimension_numbers<[1], [0], [0], [1], [0, 0, 1, 1], [], []>} : vector<16x128xf32>, vector<128x32xf32>, vector<16x32xf32> -> vector<16x32xf32>
    %c0_66 = arith.constant 0 : index
    %c0_67 = arith.constant 0 : index
    %177 = vector.load %arg12[%c0_66, %c0_67] : memref<1x32xf32, #tpu.memory_space<vmem>>, vector<1x32xf32>
    %178 = vector.broadcast %177 : vector<1x32xf32> to vector<16x32xf32>
    %179 = arith.addf %176, %178 : vector<16x32xf32>
    %180 = arith.addf %134, %179 : vector<16x32xf32>
    %c0_68 = arith.constant 0 : index
    %c0_69 = arith.constant 0 : index
    %181 = vector.load %arg13[%c0_68, %c0_69] : memref<16x32xf32, #tpu.memory_space<vmem>>, vector<16x32xf32>
    tpu.vector_store %arg13[%c0_68, %c0_69], %180 {strides = array<i32>} : memref<16x32xf32, #tpu.memory_space<vmem>>, vector<16x32xf32>,
    return
  }
}

</mosaic_0001>

<llo_original>
// kernel: forward.1
$region0: #{forward.1}
  #allocation0 [shape = 'u32[]', space=smem, size = 0x4, offset = 0x4, fixed_abs, tag = 'smem constant byte address 0x4 - core index']
  #allocation1 [shape = 'u32[144,128]{1,0:T(1,128)}', space=vmem, size = 0x12000, scoped, tag = 'internal scratch']
  %s0 = inlined_call_operand.vmem [shape: f32[16,32], index: 0, kind: input, shape index: {}]
  %s1 = inlined_call_operand.vmem [shape: f32[1,32], index: 1, kind: input, shape index: {}]
  %s2 = inlined_call_operand.vmem [shape: f32[1,32], index: 2, kind: input, shape index: {}]
  %s3 = inlined_call_operand.vmem [shape: f32[32,96], index: 3, kind: input, shape index: {}]
  %s4 = inlined_call_operand.vmem [shape: f32[1,96], index: 4, kind: input, shape index: {}]
  %s5 = inlined_call_operand.vmem [shape: f32[32,32], index: 5, kind: input, shape index: {}]
  %s6 = inlined_call_operand.vmem [shape: f32[1,32], index: 6, kind: input, shape index: {}]
  %s7 = inlined_call_operand.vmem [shape: f32[1,32], index: 7, kind: input, shape index: {}]
  %s8 = inlined_call_operand.vmem [shape: f32[1,32], index: 8, kind: input, shape index: {}]
  %s9 = inlined_call_operand.vmem [shape: f32[32,128], index: 9, kind: input, shape index: {}]
  %s10 = inlined_call_operand.vmem [shape: f32[1,128], index: 10, kind: input, shape index: {}]
  %s11 = inlined_call_operand.vmem [shape: f32[128,32], index: 11, kind: input, shape index: {}]
  %s12 = inlined_call_operand.vmem [shape: f32[1,32], index: 12, kind: input, shape index: {}]
  %s13 = inlined_call_operand.hbm [shape: f32[16,32], index: 13, kind: output, shape index: {}]
  %s14 = sld [smem:[#allocation0]]
  $region62: #{forward.1} parent=0
    _
  %s16 = ssub.s32 1, %s14
  %s17 = scalar_select 0, %s16, %s14
  $region1: #{forward.1} parent=0
    #allocation2 [shape = 'u8[8192]{0}', space=vmem, size = 0x2000, scoped, tag = 'output window, operand 0, single buffered']
    #allocation3 [shape = 's32[1]{0}', space=sflag, size = 0x4, scoped, tag = 'scoped memory for forward.1']
    %18 = vsyncpa [#allocation3], 0
    // Predicated region
    $region2: #{forward.1} parent=1 // pred_check
      _
    $region3: #{forward.1} parent=1 // pred_check_branch
      %20 = sbr.rel (0) target = $region5
    $region4: #{forward.1} parent=1 // pred_region
      _
    $region5: #{forward.1} parent=1 // pred_fallthru
      _
    // Predicated region
    $region6: #{forward.1} parent=1 // pred_check
      _
    $region7: #{forward.1} parent=1 // pred_check_branch
      %22 = sbr.rel (0) target = $region9
    $region8: #{forward.1} parent=1 // pred_region
      _
    $region9: #{forward.1} parent=1 // pred_fallthru
      _
    // Predicated region
    $region10: #{forward.1} parent=1 // pred_check
      _
    $region11: #{forward.1} parent=1 // pred_check_branch
      %24 = sbr.rel (0) target = $region13
    $region12: #{forward.1} parent=1 // pred_region
      _
    $region13: #{forward.1} parent=1 // pred_fallthru
      _
    // Predicated region
    $region14: #{forward.1} parent=1 // pred_check
      _
    $region15: #{forward.1} parent=1 // pred_check_branch
      %26 = sbr.rel (0) target = $region17
    $region16: #{forward.1} parent=1 // pred_region
      _
    $region17: #{forward.1} parent=1 // pred_fallthru
      _
    // Predicated region
    $region18: #{forward.1} parent=1 // pred_check
      _
    $region19: #{forward.1} parent=1 // pred_check_branch
      %28 = sbr.rel (0) target = $region21
    $region20: #{forward.1} parent=1 // pred_region
      _
    $region21: #{forward.1} parent=1 // pred_fallthru
      _
    // Predicated region
    $region22: #{forward.1} parent=1 // pred_check
      _
    $region23: #{forward.1} parent=1 // pred_check_branch
      %30 = sbr.rel (0) target = $region25
    $region24: #{forward.1} parent=1 // pred_region
      _
    $region25: #{forward.1} parent=1 // pred_fallthru
      _
    // Predicated region
    $region26: #{forward.1} parent=1 // pred_check
      _
    $region27: #{forward.1} parent=1 // pred_check_branch
      %32 = sbr.rel (0) target = $region29
    $region28: #{forward.1} parent=1 // pred_region
      _
    $region29: #{forward.1} parent=1 // pred_fallthru
      _
    // Predicated region
    $region30: #{forward.1} parent=1 // pred_check
      _
    $region31: #{forward.1} parent=1 // pred_check_branch
      %34 = sbr.rel (0) target = $region33
    $region32: #{forward.1} parent=1 // pred_region
      _
    $region33: #{forward.1} parent=1 // pred_fallthru
      _
    // Predicated region
    $region34: #{forward.1} parent=1 // pred_check
      _
    $region35: #{forward.1} parent=1 // pred_check_branch
      %36 = sbr.rel (0) target = $region37
    $region36: #{forward.1} parent=1 // pred_region
      _
    $region37: #{forward.1} parent=1 // pred_fallthru
      _
    // Predicated region
    $region38: #{forward.1} parent=1 // pred_check
      _
    $region39: #{forward.1} parent=1 // pred_check_branch
      %38 = sbr.rel (0) target = $region41
    $region40: #{forward.1} parent=1 // pred_region
      _
    $region41: #{forward.1} parent=1 // pred_fallthru
      _
    // Predicated region
    $region42: #{forward.1} parent=1 // pred_check
      _
    $region43: #{forward.1} parent=1 // pred_check_branch
      %40 = sbr.rel (0) target = $region45
    $region44: #{forward.1} parent=1 // pred_region
      _
    $region45: #{forward.1} parent=1 // pred_fallthru
      _
    // Predicated region
    $region46: #{forward.1} parent=1 // pred_check
      _
    $region47: #{forward.1} parent=1 // pred_check_branch
      %42 = sbr.rel (0) target = $region49
    $region48: #{forward.1} parent=1 // pred_region
      _
    $region49: #{forward.1} parent=1 // pred_fallthru
      _
    // Predicated region
    $region50: #{forward.1} parent=1 // pred_check
      _
    $region51: #{forward.1} parent=1 // pred_check_branch
      %44 = sbr.rel (0) target = $region53
    $region52: #{forward.1} parent=1 // pred_region
      _
    $region53: #{forward.1} parent=1 // pred_fallthru
      _
    %v45 = vld [vmem:[%s0] sm:$0xff]
    %v46 = vld [vmem:[%s0 + $0x8] sm:$0xff]
    %v47 = vld [vmem:[%s1] sm:$0x1]
    %v48 = vld [vmem:[%s2] sm:$0x1]
    %vm49 = vcmask 261120
    %v50 = vsel %vm49, %v45, 0.0
    %51 = vadd.xlane.f32.xlu0 %v50
    %v52 = vpop.xlane.xlu0 %51
    %v53 = vsel %vm49, %v46, 0.0
    %54 = vadd.xlane.f32.xlu0 %v53
    %v55 = vpop.xlane.xlu0 %54
    %v56 = vrcp.pop 32.0
    %v57 = vmul.f32 %v52, %v56
    %v58 = vmul.f32 %v55, %v56
    %v59 = vsub.f32 %v45, %v57
    %v60 = vsub.f32 %v46, %v58
    %v61 = vmul.f32 %v59, %v59
    %v62 = vmul.f32 %v60, %v60
    %v63 = vsel %vm49, %v61, 0.0
    %64 = vadd.xlane.f32.xlu0 %v63
    %v65 = vpop.xlane.xlu0 %64
    %v66 = vsel %vm49, %v62, 0.0
    %67 = vadd.xlane.f32.xlu0 %v66
    %v68 = vpop.xlane.xlu0 %67
    %v69 = vmul.f32 %v65, %v56
    %v70 = vmul.f32 %v68, %v56
    %v71 = vadd.f32 %v69, 1e-05
    %v72 = vadd.f32 %v70, 1e-05
    %v73 = vrsqrt.pop %v71
    %v74 = vrsqrt.pop %v72
    %v75 = vmul.f32 %v59, %v73
    %v76 = vmul.f32 %v60, %v74
    %v78 = vlaneseq
    %v79 = vshrl.u32 %v78, 7
    %v80 = vsub.s32 0, %v79
    %v81 = vrot.slane %v47, %v80
    %v83 = vmul.f32 %v75, %v81
    %v84 = vmul.f32 %v76, %v81
    %v86 = vlaneseq
    %v87 = vshrl.u32 %v86, 7
    %v88 = vsub.s32 0, %v87
    %v89 = vrot.slane %v48, %v88
    %v91 = vadd.f32 %v83, %v89
    %v92 = vadd.f32 %v84, %v89
    %v93 = vld [vmem:[%s3] sm:$0xff]
    %v94 = vld [vmem:[%s3 + $0x8] sm:$0xff]
    %v95 = vld [vmem:[%s3 + $0x10] sm:$0xff]
    %v96 = vld [vmem:[%s3 + $0x18] sm:$0xff]
    %v97 = vld [vmem:[%s4] sm:$0x1]
    %v99 = vlaneseq
    %v100 = vshrl.u32 %v99, 7
    %v101 = vsub.s32 0, %v100
    %v102 = vrot.slane %v97, %v101
    %v105 = vsel %vm49, %v91, 0
    %v108 = vsel %vm49, %v92, 0
    %110 = vmatprep.subr.mxu0 0.0
    %111 = vmatpush1.msra.mxu0 0.0
    %112 = vmatprep.subr.mxu0 0.0
    %113 = vmatpush1.msra.mxu0 0.0
    %114 = vmatprep.subr.mxu0 0.0
    %115 = vmatpush1.msra.mxu0 0.0
    %116 = vmatprep.subr.mxu0 0.0
    %117 = vmatpush1.msra.mxu0 0.0
    %118 = vmatprep.subr.mxu0 0.0
    %119 = vmatpush1.msra.mxu0 0.0
    %120 = vmatprep.subr.mxu0 0.0
    %121 = vmatpush1.msra.mxu0 0.0
    %122 = vmatprep.subr.mxu0 0.0
    %123 = vmatpush1.msra.mxu0 0.0
    %124 = vmatprep.subr.mxu0 0.0
    %125 = vmatpush1.msra.mxu0 0.0
    %126 = vmatprep.subr.mxu0 0.0
    %127 = vmatpush1.msra.mxu0 0.0
    %128 = vmatprep.subr.mxu0 0.0
    %129 = vmatpush1.msra.mxu0 0.0
    %130 = vmatprep.subr.mxu0 0.0
    %131 = vmatpush1.msra.mxu0 0.0
    %132 = vmatprep.subr.mxu0 0.0
    %133 = vmatpush1.msra.mxu0 0.0
    %134 = vmatprep.subr.mxu0 0.0
    %135 = vmatpush1.msra.mxu0 %v96
    %136 = vmatprep.subr.mxu0 0.0
    %137 = vmatpush1.msra.mxu0 %v95
    %138 = vmatprep.subr.mxu0 0.0
    %139 = vmatpush1.msra.mxu0 %v94
    %140 = vmatprep.subr.mxu0 0.0
    %141 = vmatpush1.msra.mxu0 %v93
    %142 = vmatprep.subr.mxu0 0.0
    %143 = vmatpush2.msra.mxu0 0.0
    %144 = vmatprep.subr.mxu0 0.0
    %145 = vmatpush2.msra.mxu0 0.0
    %146 = vmatprep.subr.mxu0 0.0
    %147 = vmatpush2.msra.mxu0 0.0
    %148 = vmatprep.subr.mxu0 0.0
    %149 = vmatpush2.msra.mxu0 0.0
    %150 = vmatprep.subr.mxu0 0.0
    %151 = vmatpush2.msra.mxu0 0.0
    %152 = vmatprep.subr.mxu0 0.0
    %153 = vmatpush2.msra.mxu0 0.0
    %154 = vmatprep.subr.mxu0 0.0
    %155 = vmatpush2.msra.mxu0 0.0
    %156 = vmatprep.subr.mxu0 0.0
    %157 = vmatpush2.msra.mxu0 0.0
    %158 = vmatprep.subr.mxu0 0.0
    %159 = vmatpush2.msra.mxu0 0.0
    %160 = vmatprep.subr.mxu0 0.0
    %161 = vmatpush2.msra.mxu0 0.0
    %162 = vmatprep.subr.mxu0 0.0
    %163 = vmatpush2.msra.mxu0 0.0
    %164 = vmatprep.subr.mxu0 0.0
    %165 = vmatpush2.msra.mxu0 0.0
    %166 = vmatprep.subr.mxu0 0.0
    %167 = vmatpush2.msra.mxu0 0.0
    %168 = vmatprep.subr.mxu0 0.0
    %169 = vmatpush2.msra.mxu0 0.0
    %170 = vmatprep.subr.mxu0 0.0
    %171 = vmatpush2.msra.mxu0 0.0
    %172 = vmatprep.subr.mxu0 0.0
    %173 = vmatpush2.msra.mxu0 0.0
    %174 = vmatprep.mubr.f32.mxu0 0.0
    %175 = vmatmul.mubr.f32.gmra.mxu0 %v105
    %v176 = vpop.f32.mrf.mxu0
    %v177 = vadd.f32 %v102, %v176
    %v178 = vpop.f32.mrf.mxu0
    %179 = vmatprep.mubr.f32.mxu0 0.0
    %180 = vmatmul.mubr.f32.gmra.mxu0 %v108
    %v181 = vpop.f32.mrf.mxu0
    %v182 = vadd.f32 %v102, %v181
    %v183 = vpop.f32.mrf.mxu0
    %184 = vdwg.mxu0
    %v185 = vlaneseq
    %v186 = vshrl.u32 %v185, 7
    %v187 = vlaneseq
    %v188 = vand.u32 %v187, 127
    %vm189 = vcmp.ge.s32.totalorder %v186, %v188
    %v190 = vsel %vm189, 0.0, -1e+30
    %v191 = vld [vmem:[%s5] sm:$0xff]
    %v192 = vld [vmem:[%s5 + $0x8] sm:$0xff]
    %v193 = vld [vmem:[%s5 + $0x10] sm:$0xff]
    %v194 = vld [vmem:[%s5 + $0x18] sm:$0xff]
    %196 = vrot.lane.b32.xlu0 %v177, 96
    %v197 = vpop.permute.xlu0 %196
    %vm198 = vcmask 64512
    %v199 = vsel %vm198, %v177, 0
    %v201 = vsel %vm198, %v197, 0
    %203 = vmatprep.subr.mxu0 0.0
    %204 = vmatpush1.xpose.msra.mxu0 0.0
    %205 = vmatprep.subr.mxu0 0.0
    %206 = vmatpush1.xpose.msra.mxu0 0.0
    %207 = vmatprep.subr.mxu0 0.0
    %208 = vmatpush1.xpose.msra.mxu0 0.0
    %209 = vmatprep.subr.mxu0 0.0
    %210 = vmatpush1.xpose.msra.mxu0 0.0
    %211 = vmatprep.subr.mxu0 0.0
    %212 = vmatpush1.xpose.msra.mxu0 0.0
    %213 = vmatprep.subr.mxu0 0.0
    %214 = vmatpush1.xpose.msra.mxu0 0.0
    %215 = vmatprep.subr.mxu0 0.0
    %216 = vmatpush1.xpose.msra.mxu0 0.0
    %217 = vmatprep.subr.mxu0 0.0
    %218 = vmatpush1.xpose.msra.mxu0 0.0
    %219 = vmatprep.subr.mxu0 0.0
    %220 = vmatpush1.xpose.msra.mxu0 0.0
    %221 = vmatprep.subr.mxu0 0.0
    %222 = vmatpush1.xpose.msra.mxu0 0.0
    %223 = vmatprep.subr.mxu0 0.0
    %224 = vmatpush1.xpose.msra.mxu0 0.0
    %225 = vmatprep.subr.mxu0 0.0
    %226 = vmatpush1.xpose.msra.mxu0 0.0
    %227 = vmatprep.subr.mxu0 0.0
    %228 = vmatpush1.xpose.msra.mxu0 0.0
    %229 = vmatprep.subr.mxu0 0.0
    %230 = vmatpush1.xpose.msra.mxu0 0.0
    %231 = vmatprep.subr.mxu0 0.0
    %232 = vmatpush1.xpose.msra.mxu0 0.0
    %233 = vmatprep.subr.mxu0 0.0
    %234 = vmatpush1.xpose.msra.mxu0 %v201
    %235 = vmatprep.subr.mxu0 0.0
    %236 = vmatpush2.xpose.msra.mxu0 0.0
    %237 = vmatprep.subr.mxu0 0.0
    %238 = vmatpush2.xpose.msra.mxu0 0.0
    %239 = vmatprep.subr.mxu0 0.0
    %240 = vmatpush2.xpose.msra.mxu0 0.0
    %241 = vmatprep.subr.mxu0 0.0
    %242 = vmatpush2.xpose.msra.mxu0 0.0
    %243 = vmatprep.subr.mxu0 0.0
    %244 = vmatpush2.xpose.msra.mxu0 0.0
    %245 = vmatprep.subr.mxu0 0.0
    %246 = vmatpush2.xpose.msra.mxu0 0.0
    %247 = vmatprep.subr.mxu0 0.0
    %248 = vmatpush2.xpose.msra.mxu0 0.0
    %249 = vmatprep.subr.mxu0 0.0
    %250 = vmatpush2.xpose.msra.mxu0 0.0
    %251 = vmatprep.subr.mxu0 0.0
    %252 = vmatpush2.xpose.msra.mxu0 0.0
    %253 = vmatprep.subr.mxu0 0.0
    %254 = vmatpush2.xpose.msra.mxu0 0.0
    %255 = vmatprep.subr.mxu0 0.0
    %256 = vmatpush2.xpose.msra.mxu0 0.0
    %257 = vmatprep.subr.mxu0 0.0
    %258 = vmatpush2.xpose.msra.mxu0 0.0
    %259 = vmatprep.subr.mxu0 0.0
    %260 = vmatpush2.xpose.msra.mxu0 0.0
    %261 = vmatprep.subr.mxu0 0.0
    %262 = vmatpush2.xpose.msra.mxu0 0.0
    %263 = vmatprep.subr.mxu0 0.0
    %264 = vmatpush2.xpose.msra.mxu0 0.0
    %265 = vmatprep.subr.mxu0 0.0
    %266 = vmatpush2.xpose.msra.mxu0 0.0
    %267 = vmatprep.mubr.f32.mxu0 0.0
    %268 = vmatmul.mubr.f32.gmra.mxu0 %v199
    %v269 = vpop.f32.mrf.mxu0
    %v270 = vadd.f32 0.0, %v269
    %v271 = vpop.f32.mrf.mxu0
    %272 = vdwg.mxu0
    %274 = vrot.lane.b32.xlu0 %v182, 96
    %v275 = vpop.permute.xlu0 %274
    %v276 = vsel %vm198, %v182, 0
    %v278 = vsel %vm198, %v275, 0
    %280 = vmatprep.subr.mxu0 0.0
    %281 = vmatpush1.xpose.msra.mxu0 0.0
    %282 = vmatprep.subr.mxu0 0.0
    %283 = vmatpush1.xpose.msra.mxu0 0.0
    %284 = vmatprep.subr.mxu0 0.0
    %285 = vmatpush1.xpose.msra.mxu0 0.0
    %286 = vmatprep.subr.mxu0 0.0
    %287 = vmatpush1.xpose.msra.mxu0 0.0
    %288 = vmatprep.subr.mxu0 0.0
    %289 = vmatpush1.xpose.msra.mxu0 0.0
    %290 = vmatprep.subr.mxu0 0.0
    %291 = vmatpush1.xpose.msra.mxu0 0.0
    %292 = vmatprep.subr.mxu0 0.0
    %293 = vmatpush1.xpose.msra.mxu0 0.0
    %294 = vmatprep.subr.mxu0 0.0
    %295 = vmatpush1.xpose.msra.mxu0 0.0
    %296 = vmatprep.subr.mxu0 0.0
    %297 = vmatpush1.xpose.msra.mxu0 0.0
    %298 = vmatprep.subr.mxu0 0.0
    %299 = vmatpush1.xpose.msra.mxu0 0.0
    %300 = vmatprep.subr.mxu0 0.0
    %301 = vmatpush1.xpose.msra.mxu0 0.0
    %302 = vmatprep.subr.mxu0 0.0
    %303 = vmatpush1.xpose.msra.mxu0 0.0
    %304 = vmatprep.subr.mxu0 0.0
    %305 = vmatpush1.xpose.msra.mxu0 0.0
    %306 = vmatprep.subr.mxu0 0.0
    %307 = vmatpush1.xpose.msra.mxu0 0.0
    %308 = vmatprep.subr.mxu0 0.0
    %309 = vmatpush1.xpose.msra.mxu0 0.0
    %310 = vmatprep.subr.mxu0 0.0
    %311 = vmatpush1.xpose.msra.mxu0 %v278
    %312 = vmatprep.subr.mxu0 0.0
    %313 = vmatpush2.xpose.msra.mxu0 0.0
    %314 = vmatprep.subr.mxu0 0.0
    %315 = vmatpush2.xpose.msra.mxu0 0.0
    %316 = vmatprep.subr.mxu0 0.0
    %317 = vmatpush2.xpose.msra.mxu0 0.0
    %318 = vmatprep.subr.mxu0 0.0
    %319 = vmatpush2.xpose.msra.mxu0 0.0
    %320 = vmatprep.subr.mxu0 0.0
    %321 = vmatpush2.xpose.msra.mxu0 0.0
    %322 = vmatprep.subr.mxu0 0.0
    %323 = vmatpush2.xpose.msra.mxu0 0.0
    %324 = vmatprep.subr.mxu0 0.0
    %325 = vmatpush2.xpose.msra.mxu0 0.0
    %326 = vmatprep.subr.mxu0 0.0
    %327 = vmatpush2.xpose.msra.mxu0 0.0
    %328 = vmatprep.subr.mxu0 0.0
    %329 = vmatpush2.xpose.msra.mxu0 0.0
    %330 = vmatprep.subr.mxu0 0.0
    %331 = vmatpush2.xpose.msra.mxu0 0.0
    %332 = vmatprep.subr.mxu0 0.0
    %333 = vmatpush2.xpose.msra.mxu0 0.0
    %334 = vmatprep.subr.mxu0 0.0
    %335 = vmatpush2.xpose.msra.mxu0 0.0
    %336 = vmatprep.subr.mxu0 0.0
    %337 = vmatpush2.xpose.msra.mxu0 0.0
    %338 = vmatprep.subr.mxu0 0.0
    %339 = vmatpush2.xpose.msra.mxu0 0.0
    %340 = vmatprep.subr.mxu0 0.0
    %341 = vmatpush2.xpose.msra.mxu0 0.0
    %342 = vmatprep.subr.mxu0 0.0
    %343 = vmatpush2.xpose.msra.mxu0 0.0
    %344 = vmatprep.mubr.f32.mxu0 0.0
    %345 = vmatmul.mubr.f32.gmra.mxu0 %v276
    %v346 = vpop.f32.mrf.mxu0
    %v347 = vadd.f32 0.0, %v346
    %v348 = vpop.f32.mrf.mxu0
    %349 = vdwg.mxu0
    %v350 = vmul.f32 %v270, 0.35355338
    %v351 = vmul.f32 %v347, 0.35355338
    %v352 = vadd.f32 %v350, %v190
    %v353 = vadd.f32 %v351, %v190
    %v354 = vsel %vm198, %v352, -inf
    %355 = vmax.xlane.f32.xlu0 %v354
    %v356 = vpop.xlane.xlu0 %355
    %v357 = vsel %vm198, %v353, -inf
    %358 = vmax.xlane.f32.xlu0 %v357
    %v359 = vpop.xlane.xlu0 %358
    %v360 = vsub.f32 %v352, %v356
    %v361 = vsub.f32 %v353, %v359
    %v362 = vmul.f32 %v360, 1.442695
    %v363 = vpow.pop %v362
    %v364 = vmul.f32 %v361, 1.442695
    %v365 = vpow.pop %v364
    %v366 = vsel %vm198, %v363, 0.0
    %367 = vadd.xlane.f32.xlu0 %v366
    %v368 = vpop.xlane.xlu0 %367
    %v369 = vsel %vm198, %v365, 0.0
    %370 = vadd.xlane.f32.xlu0 %v369
    %v371 = vpop.xlane.xlu0 %370
    %v372 = vrcp.pop %v368
    %v373 = vmul.f32 %v363, %v372
    %v374 = vrcp.pop %v371
    %v375 = vmul.f32 %v365, %v374
    %376 = vrot.lane.b32.xlu0 %v177, 64
    %v377 = vpop.permute.xlu0 %376
    %v380 = vsel %vm198, %v373, 0
    %382 = vmatprep.subr.mxu0 0.0
    %383 = vmatpush1.msra.mxu0 0.0
    %384 = vmatprep.subr.mxu0 0.0
    %385 = vmatpush1.msra.mxu0 0.0
    %386 = vmatprep.subr.mxu0 0.0
    %387 = vmatpush1.msra.mxu0 0.0
    %388 = vmatprep.subr.mxu0 0.0
    %389 = vmatpush1.msra.mxu0 0.0
    %390 = vmatprep.subr.mxu0 0.0
    %391 = vmatpush1.msra.mxu0 0.0
    %392 = vmatprep.subr.mxu0 0.0
    %393 = vmatpush1.msra.mxu0 0.0
    %394 = vmatprep.subr.mxu0 0.0
    %395 = vmatpush1.msra.mxu0 0.0
    %396 = vmatprep.subr.mxu0 0.0
    %397 = vmatpush1.msra.mxu0 0.0
    %398 = vmatprep.subr.mxu0 0.0
    %399 = vmatpush1.msra.mxu0 0.0
    %400 = vmatprep.subr.mxu0 0.0
    %401 = vmatpush1.msra.mxu0 0.0
    %402 = vmatprep.subr.mxu0 0.0
    %403 = vmatpush1.msra.mxu0 0.0
    %404 = vmatprep.subr.mxu0 0.0
    %405 = vmatpush1.msra.mxu0 0.0
    %406 = vmatprep.subr.mxu0 0.0
    %407 = vmatpush1.msra.mxu0 0.0
    %408 = vmatprep.subr.mxu0 0.0
    %409 = vmatpush1.msra.mxu0 0.0
    %410 = vmatprep.subr.mxu0 0.0
    %411 = vmatpush1.msra.mxu0 0.0
    %412 = vmatprep.subr.mxu0 0.0
    %413 = vmatpush1.msra.mxu0 %v377
    %414 = vmatprep.subr.mxu0 0.0
    %415 = vmatpush2.msra.mxu0 0.0
    %416 = vmatprep.subr.mxu0 0.0
    %417 = vmatpush2.msra.mxu0 0.0
    %418 = vmatprep.subr.mxu0 0.0
    %419 = vmatpush2.msra.mxu0 0.0
    %420 = vmatprep.subr.mxu0 0.0
    %421 = vmatpush2.msra.mxu0 0.0
    %422 = vmatprep.subr.mxu0 0.0
    %423 = vmatpush2.msra.mxu0 0.0
    %424 = vmatprep.subr.mxu0 0.0
    %425 = vmatpush2.msra.mxu0 0.0
    %426 = vmatprep.subr.mxu0 0.0
    %427 = vmatpush2.msra.mxu0 0.0
    %428 = vmatprep.subr.mxu0 0.0
    %429 = vmatpush2.msra.mxu0 0.0
    %430 = vmatprep.subr.mxu0 0.0
    %431 = vmatpush2.msra.mxu0 0.0
    %432 = vmatprep.subr.mxu0 0.0
    %433 = vmatpush2.msra.mxu0 0.0
    %434 = vmatprep.subr.mxu0 0.0
    %435 = vmatpush2.msra.mxu0 0.0
    %436 = vmatprep.subr.mxu0 0.0
    %437 = vmatpush2.msra.mxu0 0.0
    %438 = vmatprep.subr.mxu0 0.0
    %439 = vmatpush2.msra.mxu0 0.0
    %440 = vmatprep.subr.mxu0 0.0
    %441 = vmatpush2.msra.mxu0 0.0
    %442 = vmatprep.subr.mxu0 0.0
    %443 = vmatpush2.msra.mxu0 0.0
    %444 = vmatprep.subr.mxu0 0.0
    %445 = vmatpush2.msra.mxu0 0.0
    %446 = vmatprep.mubr.f32.mxu0 0.0
    %447 = vmatmul.mubr.f32.gmra.mxu0 %v380
    %v448 = vpop.f32.mrf.mxu0
    %v449 = vadd.f32 0.0, %v448
    %v450 = vpop.f32.mrf.mxu0
    %451 = vdwg.mxu0
    %452 = vrot.lane.b32.xlu0 %v182, 64
    %v453 = vpop.permute.xlu0 %452
    %v456 = vsel %vm198, %v375, 0
    %458 = vmatprep.subr.mxu0 0.0
    %459 = vmatpush1.msra.mxu0 0.0
    %460 = vmatprep.subr.mxu0 0.0
    %461 = vmatpush1.msra.mxu0 0.0
    %462 = vmatprep.subr.mxu0 0.0
    %463 = vmatpush1.msra.mxu0 0.0
    %464 = vmatprep.subr.mxu0 0.0
    %465 = vmatpush1.msra.mxu0 0.0
    %466 = vmatprep.subr.mxu0 0.0
    %467 = vmatpush1.msra.mxu0 0.0
    %468 = vmatprep.subr.mxu0 0.0
    %469 = vmatpush1.msra.mxu0 0.0
    %470 = vmatprep.subr.mxu0 0.0
    %471 = vmatpush1.msra.mxu0 0.0
    %472 = vmatprep.subr.mxu0 0.0
    %473 = vmatpush1.msra.mxu0 0.0
    %474 = vmatprep.subr.mxu0 0.0
    %475 = vmatpush1.msra.mxu0 0.0
    %476 = vmatprep.subr.mxu0 0.0
    %477 = vmatpush1.msra.mxu0 0.0
    %478 = vmatprep.subr.mxu0 0.0
    %479 = vmatpush1.msra.mxu0 0.0
    %480 = vmatprep.subr.mxu0 0.0
    %481 = vmatpush1.msra.mxu0 0.0
    %482 = vmatprep.subr.mxu0 0.0
    %483 = vmatpush1.msra.mxu0 0.0
    %484 = vmatprep.subr.mxu0 0.0
    %485 = vmatpush1.msra.mxu0 0.0
    %486 = vmatprep.subr.mxu0 0.0
    %487 = vmatpush1.msra.mxu0 0.0
    %488 = vmatprep.subr.mxu0 0.0
    %489 = vmatpush1.msra.mxu0 %v453
    %490 = vmatprep.subr.mxu0 0.0
    %491 = vmatpush2.msra.mxu0 0.0
    %492 = vmatprep.subr.mxu0 0.0
    %493 = vmatpush2.msra.mxu0 0.0
    %494 = vmatprep.subr.mxu0 0.0
    %495 = vmatpush2.msra.mxu0 0.0
    %496 = vmatprep.subr.mxu0 0.0
    %497 = vmatpush2.msra.mxu0 0.0
    %498 = vmatprep.subr.mxu0 0.0
    %499 = vmatpush2.msra.mxu0 0.0
    %500 = vmatprep.subr.mxu0 0.0
    %501 = vmatpush2.msra.mxu0 0.0
    %502 = vmatprep.subr.mxu0 0.0
    %503 = vmatpush2.msra.mxu0 0.0
    %504 = vmatprep.subr.mxu0 0.0
    %505 = vmatpush2.msra.mxu0 0.0
    %506 = vmatprep.subr.mxu0 0.0
    %507 = vmatpush2.msra.mxu0 0.0
    %508 = vmatprep.subr.mxu0 0.0
    %509 = vmatpush2.msra.mxu0 0.0
    %510 = vmatprep.subr.mxu0 0.0
    %511 = vmatpush2.msra.mxu0 0.0
    %512 = vmatprep.subr.mxu0 0.0
    %513 = vmatpush2.msra.mxu0 0.0
    %514 = vmatprep.subr.mxu0 0.0
    %515 = vmatpush2.msra.mxu0 0.0
    %516 = vmatprep.subr.mxu0 0.0
    %517 = vmatpush2.msra.mxu0 0.0
    %518 = vmatprep.subr.mxu0 0.0
    %519 = vmatpush2.msra.mxu0 0.0
    %520 = vmatprep.subr.mxu0 0.0
    %521 = vmatpush2.msra.mxu0 0.0
    %522 = vmatprep.mubr.f32.mxu0 0.0
    %523 = vmatmul.mubr.f32.gmra.mxu0 %v456
    %v524 = vpop.f32.mrf.mxu0
    %v525 = vadd.f32 0.0, %v524
    %v526 = vpop.f32.mrf.mxu0
    %527 = vdwg.mxu0
    %528 = vrot.lane.b32.xlu0 %v177, 120
    %v529 = vpop.permute.xlu0 %528
    %530 = vrot.lane.b32.xlu0 %v177, 88
    %v531 = vpop.permute.xlu0 %530
    %v532 = vsel %vm198, %v529, 0
    %v534 = vsel %vm198, %v531, 0
    %536 = vmatprep.subr.mxu0 0.0
    %537 = vmatpush1.xpose.msra.mxu0 0.0
    %538 = vmatprep.subr.mxu0 0.0
    %539 = vmatpush1.xpose.msra.mxu0 0.0
    %540 = vmatprep.subr.mxu0 0.0
    %541 = vmatpush1.xpose.msra.mxu0 0.0
    %542 = vmatprep.subr.mxu0 0.0
    %543 = vmatpush1.xpose.msra.mxu0 0.0
    %544 = vmatprep.subr.mxu0 0.0
    %545 = vmatpush1.xpose.msra.mxu0 0.0
    %546 = vmatprep.subr.mxu0 0.0
    %547 = vmatpush1.xpose.msra.mxu0 0.0
    %548 = vmatprep.subr.mxu0 0.0
    %549 = vmatpush1.xpose.msra.mxu0 0.0
    %550 = vmatprep.subr.mxu0 0.0
    %551 = vmatpush1.xpose.msra.mxu0 0.0
    %552 = vmatprep.subr.mxu0 0.0
    %553 = vmatpush1.xpose.msra.mxu0 0.0
    %554 = vmatprep.subr.mxu0 0.0
    %555 = vmatpush1.xpose.msra.mxu0 0.0
    %556 = vmatprep.subr.mxu0 0.0
    %557 = vmatpush1.xpose.msra.mxu0 0.0
    %558 = vmatprep.subr.mxu0 0.0
    %559 = vmatpush1.xpose.msra.mxu0 0.0
    %560 = vmatprep.subr.mxu0 0.0
    %561 = vmatpush1.xpose.msra.mxu0 0.0
    %562 = vmatprep.subr.mxu0 0.0
    %563 = vmatpush1.xpose.msra.mxu0 0.0
    %564 = vmatprep.subr.mxu0 0.0
    %565 = vmatpush1.xpose.msra.mxu0 0.0
    %566 = vmatprep.subr.mxu0 0.0
    %567 = vmatpush1.xpose.msra.mxu0 %v534
    %568 = vmatprep.subr.mxu0 0.0
    %569 = vmatpush2.xpose.msra.mxu0 0.0
    %570 = vmatprep.subr.mxu0 0.0
    %571 = vmatpush2.xpose.msra.mxu0 0.0
    %572 = vmatprep.subr.mxu0 0.0
    %573 = vmatpush2.xpose.msra.mxu0 0.0
    %574 = vmatprep.subr.mxu0 0.0
    %575 = vmatpush2.xpose.msra.mxu0 0.0
    %576 = vmatprep.subr.mxu0 0.0
    %577 = vmatpush2.xpose.msra.mxu0 0.0
    %578 = vmatprep.subr.mxu0 0.0
    %579 = vmatpush2.xpose.msra.mxu0 0.0
    %580 = vmatprep.subr.mxu0 0.0
    %581 = vmatpush2.xpose.msra.mxu0 0.0
    %582 = vmatprep.subr.mxu0 0.0
    %583 = vmatpush2.xpose.msra.mxu0 0.0
    %584 = vmatprep.subr.mxu0 0.0
    %585 = vmatpush2.xpose.msra.mxu0 0.0
    %586 = vmatprep.subr.mxu0 0.0
    %587 = vmatpush2.xpose.msra.mxu0 0.0
    %588 = vmatprep.subr.mxu0 0.0
    %589 = vmatpush2.xpose.msra.mxu0 0.0
    %590 = vmatprep.subr.mxu0 0.0
    %591 = vmatpush2.xpose.msra.mxu0 0.0
    %592 = vmatprep.subr.mxu0 0.0
    %593 = vmatpush2.xpose.msra.mxu0 0.0
    %594 = vmatprep.subr.mxu0 0.0
    %595 = vmatpush2.xpose.msra.mxu0 0.0
    %596 = vmatprep.subr.mxu0 0.0
    %597 = vmatpush2.xpose.msra.mxu0 0.0
    %598 = vmatprep.subr.mxu0 0.0
    %599 = vmatpush2.xpose.msra.mxu0 0.0
    %600 = vmatprep.mubr.f32.mxu0 0.0
    %601 = vmatmul.mubr.f32.gmra.mxu0 %v532
    %v602 = vpop.f32.mrf.mxu0
    %v603 = vadd.f32 0.0, %v602
    %v604 = vpop.f32.mrf.mxu0
    %605 = vdwg.mxu0
    %606 = vrot.lane.b32.xlu0 %v182, 120
    %v607 = vpop.permute.xlu0 %606
    %608 = vrot.lane.b32.xlu0 %v182, 88
    %v609 = vpop.permute.xlu0 %608
    %v610 = vsel %vm198, %v607, 0
    %v612 = vsel %vm198, %v609, 0
    %614 = vmatprep.subr.mxu0 0.0
    %615 = vmatpush1.xpose.msra.mxu0 0.0
    %616 = vmatprep.subr.mxu0 0.0
    %617 = vmatpush1.xpose.msra.mxu0 0.0
    %618 = vmatprep.subr.mxu0 0.0
    %619 = vmatpush1.xpose.msra.mxu0 0.0
    %620 = vmatprep.subr.mxu0 0.0
    %621 = vmatpush1.xpose.msra.mxu0 0.0
    %622 = vmatprep.subr.mxu0 0.0
    %623 = vmatpush1.xpose.msra.mxu0 0.0
    %624 = vmatprep.subr.mxu0 0.0
    %625 = vmatpush1.xpose.msra.mxu0 0.0
    %626 = vmatprep.subr.mxu0 0.0
    %627 = vmatpush1.xpose.msra.mxu0 0.0
    %628 = vmatprep.subr.mxu0 0.0
    %629 = vmatpush1.xpose.msra.mxu0 0.0
    %630 = vmatprep.subr.mxu0 0.0
    %631 = vmatpush1.xpose.msra.mxu0 0.0
    %632 = vmatprep.subr.mxu0 0.0
    %633 = vmatpush1.xpose.msra.mxu0 0.0
    %634 = vmatprep.subr.mxu0 0.0
    %635 = vmatpush1.xpose.msra.mxu0 0.0
    %636 = vmatprep.subr.mxu0 0.0
    %637 = vmatpush1.xpose.msra.mxu0 0.0
    %638 = vmatprep.subr.mxu0 0.0
    %639 = vmatpush1.xpose.msra.mxu0 0.0
    %640 = vmatprep.subr.mxu0 0.0
    %641 = vmatpush1.xpose.msra.mxu0 0.0
    %642 = vmatprep.subr.mxu0 0.0
    %643 = vmatpush1.xpose.msra.mxu0 0.0
    %644 = vmatprep.subr.mxu0 0.0
    %645 = vmatpush1.xpose.msra.mxu0 %v612
    %646 = vmatprep.subr.mxu0 0.0
    %647 = vmatpush2.xpose.msra.mxu0 0.0
    %648 = vmatprep.subr.mxu0 0.0
    %649 = vmatpush2.xpose.msra.mxu0 0.0
    %650 = vmatprep.subr.mxu0 0.0
    %651 = vmatpush2.xpose.msra.mxu0 0.0
    %652 = vmatprep.subr.mxu0 0.0
    %653 = vmatpush2.xpose.msra.mxu0 0.0
    %654 = vmatprep.subr.mxu0 0.0
    %655 = vmatpush2.xpose.msra.mxu0 0.0
    %656 = vmatprep.subr.mxu0 0.0
    %657 = vmatpush2.xpose.msra.mxu0 0.0
    %658 = vmatprep.subr.mxu0 0.0
    %659 = vmatpush2.xpose.msra.mxu0 0.0
    %660 = vmatprep.subr.mxu0 0.0
    %661 = vmatpush2.xpose.msra.mxu0 0.0
    %662 = vmatprep.subr.mxu0 0.0
    %663 = vmatpush2.xpose.msra.mxu0 0.0
    %664 = vmatprep.subr.mxu0 0.0
    %665 = vmatpush2.xpose.msra.mxu0 0.0
    %666 = vmatprep.subr.mxu0 0.0
    %667 = vmatpush2.xpose.msra.mxu0 0.0
    %668 = vmatprep.subr.mxu0 0.0
    %669 = vmatpush2.xpose.msra.mxu0 0.0
    %670 = vmatprep.subr.mxu0 0.0
    %671 = vmatpush2.xpose.msra.mxu0 0.0
    %672 = vmatprep.subr.mxu0 0.0
    %673 = vmatpush2.xpose.msra.mxu0 0.0
    %674 = vmatprep.subr.mxu0 0.0
    %675 = vmatpush2.xpose.msra.mxu0 0.0
    %676 = vmatprep.subr.mxu0 0.0
    %677 = vmatpush2.xpose.msra.mxu0 0.0
    %678 = vmatprep.mubr.f32.mxu0 0.0
    %679 = vmatmul.mubr.f32.gmra.mxu0 %v610
    %v680 = vpop.f32.mrf.mxu0
    %v681 = vadd.f32 0.0, %v680
    %v682 = vpop.f32.mrf.mxu0
    %683 = vdwg.mxu0
    %v684 = vmul.f32 %v603, 0.35355338
    %v685 = vmul.f32 %v681, 0.35355338
    %v686 = vadd.f32 %v684, %v190
    %v687 = vadd.f32 %v685, %v190
    %v688 = vsel %vm198, %v686, -inf
    %689 = vmax.xlane.f32.xlu0 %v688
    %v690 = vpop.xlane.xlu0 %689
    %v691 = vsel %vm198, %v687, -inf
    %692 = vmax.xlane.f32.xlu0 %v691
    %v693 = vpop.xlane.xlu0 %692
    %v694 = vsub.f32 %v686, %v690
    %v695 = vsub.f32 %v687, %v693
    %v696 = vmul.f32 %v694, 1.442695
    %v697 = vpow.pop %v696
    %v698 = vmul.f32 %v695, 1.442695
    %v699 = vpow.pop %v698
    %v700 = vsel %vm198, %v697, 0.0
    %701 = vadd.xlane.f32.xlu0 %v700
    %v702 = vpop.xlane.xlu0 %701
    %v703 = vsel %vm198, %v699, 0.0
    %704 = vadd.xlane.f32.xlu0 %v703
    %v705 = vpop.xlane.xlu0 %704
    %v706 = vrcp.pop %v702
    %v707 = vmul.f32 %v697, %v706
    %v708 = vrcp.pop %v705
    %v709 = vmul.f32 %v699, %v708
    %710 = vrot.lane.b32.xlu0 %v177, 56
    %v711 = vpop.permute.xlu0 %710
    %v714 = vsel %vm198, %v707, 0
    %716 = vmatprep.subr.mxu0 0.0
    %717 = vmatpush1.msra.mxu0 0.0
    %718 = vmatprep.subr.mxu0 0.0
    %719 = vmatpush1.msra.mxu0 0.0
    %720 = vmatprep.subr.mxu0 0.0
    %721 = vmatpush1.msra.mxu0 0.0
    %722 = vmatprep.subr.mxu0 0.0
    %723 = vmatpush1.msra.mxu0 0.0
    %724 = vmatprep.subr.mxu0 0.0
    %725 = vmatpush1.msra.mxu0 0.0
    %726 = vmatprep.subr.mxu0 0.0
    %727 = vmatpush1.msra.mxu0 0.0
    %728 = vmatprep.subr.mxu0 0.0
    %729 = vmatpush1.msra.mxu0 0.0
    %730 = vmatprep.subr.mxu0 0.0
    %731 = vmatpush1.msra.mxu0 0.0
    %732 = vmatprep.subr.mxu0 0.0
    %733 = vmatpush1.msra.mxu0 0.0
    %734 = vmatprep.subr.mxu0 0.0
    %735 = vmatpush1.msra.mxu0 0.0
    %736 = vmatprep.subr.mxu0 0.0
    %737 = vmatpush1.msra.mxu0 0.0
    %738 = vmatprep.subr.mxu0 0.0
    %739 = vmatpush1.msra.mxu0 0.0
    %740 = vmatprep.subr.mxu0 0.0
    %741 = vmatpush1.msra.mxu0 0.0
    %742 = vmatprep.subr.mxu0 0.0
    %743 = vmatpush1.msra.mxu0 0.0
    %744 = vmatprep.subr.mxu0 0.0
    %745 = vmatpush1.msra.mxu0 0.0
    %746 = vmatprep.subr.mxu0 0.0
    %747 = vmatpush1.msra.mxu0 %v711
    %748 = vmatprep.subr.mxu0 0.0
    %749 = vmatpush2.msra.mxu0 0.0
    %750 = vmatprep.subr.mxu0 0.0
    %751 = vmatpush2.msra.mxu0 0.0
    %752 = vmatprep.subr.mxu0 0.0
    %753 = vmatpush2.msra.mxu0 0.0
    %754 = vmatprep.subr.mxu0 0.0
    %755 = vmatpush2.msra.mxu0 0.0
    %756 = vmatprep.subr.mxu0 0.0
    %757 = vmatpush2.msra.mxu0 0.0
    %758 = vmatprep.subr.mxu0 0.0
    %759 = vmatpush2.msra.mxu0 0.0
    %760 = vmatprep.subr.mxu0 0.0
    %761 = vmatpush2.msra.mxu0 0.0
    %762 = vmatprep.subr.mxu0 0.0
    %763 = vmatpush2.msra.mxu0 0.0
    %764 = vmatprep.subr.mxu0 0.0
    %765 = vmatpush2.msra.mxu0 0.0
    %766 = vmatprep.subr.mxu0 0.0
    %767 = vmatpush2.msra.mxu0 0.0
    %768 = vmatprep.subr.mxu0 0.0
    %769 = vmatpush2.msra.mxu0 0.0
    %770 = vmatprep.subr.mxu0 0.0
    %771 = vmatpush2.msra.mxu0 0.0
    %772 = vmatprep.subr.mxu0 0.0
    %773 = vmatpush2.msra.mxu0 0.0
    %774 = vmatprep.subr.mxu0 0.0
    %775 = vmatpush2.msra.mxu0 0.0
    %776 = vmatprep.subr.mxu0 0.0
    %777 = vmatpush2.msra.mxu0 0.0
    %778 = vmatprep.subr.mxu0 0.0
    %779 = vmatpush2.msra.mxu0 0.0
    %780 = vmatprep.mubr.f32.mxu0 0.0
    %781 = vmatmul.mubr.f32.gmra.mxu0 %v714
    %v782 = vpop.f32.mrf.mxu0
    %v783 = vadd.f32 0.0, %v782
    %v784 = vpop.f32.mrf.mxu0
    %785 = vdwg.mxu0
    %786 = vrot.lane.b32.xlu0 %v182, 56
    %v787 = vpop.permute.xlu0 %786
    %v790 = vsel %vm198, %v709, 0
    %792 = vmatprep.subr.mxu0 0.0
    %793 = vmatpush1.msra.mxu0 0.0
    %794 = vmatprep.subr.mxu0 0.0
    %795 = vmatpush1.msra.mxu0 0.0
    %796 = vmatprep.subr.mxu0 0.0
    %797 = vmatpush1.msra.mxu0 0.0
    %798 = vmatprep.subr.mxu0 0.0
    %799 = vmatpush1.msra.mxu0 0.0
    %800 = vmatprep.subr.mxu0 0.0
    %801 = vmatpush1.msra.mxu0 0.0
    %802 = vmatprep.subr.mxu0 0.0
    %803 = vmatpush1.msra.mxu0 0.0
    %804 = vmatprep.subr.mxu0 0.0
    %805 = vmatpush1.msra.mxu0 0.0
    %806 = vmatprep.subr.mxu0 0.0
    %807 = vmatpush1.msra.mxu0 0.0
    %808 = vmatprep.subr.mxu0 0.0
    %809 = vmatpush1.msra.mxu0 0.0
    %810 = vmatprep.subr.mxu0 0.0
    %811 = vmatpush1.msra.mxu0 0.0
    %812 = vmatprep.subr.mxu0 0.0
    %813 = vmatpush1.msra.mxu0 0.0
    %814 = vmatprep.subr.mxu0 0.0
    %815 = vmatpush1.msra.mxu0 0.0
    %816 = vmatprep.subr.mxu0 0.0
    %817 = vmatpush1.msra.mxu0 0.0
    %818 = vmatprep.subr.mxu0 0.0
    %819 = vmatpush1.msra.mxu0 0.0
    %820 = vmatprep.subr.mxu0 0.0
    %821 = vmatpush1.msra.mxu0 0.0
    %822 = vmatprep.subr.mxu0 0.0
    %823 = vmatpush1.msra.mxu0 %v787
    %824 = vmatprep.subr.mxu0 0.0
    %825 = vmatpush2.msra.mxu0 0.0
    %826 = vmatprep.subr.mxu0 0.0
    %827 = vmatpush2.msra.mxu0 0.0
    %828 = vmatprep.subr.mxu0 0.0
    %829 = vmatpush2.msra.mxu0 0.0
    %830 = vmatprep.subr.mxu0 0.0
    %831 = vmatpush2.msra.mxu0 0.0
    %832 = vmatprep.subr.mxu0 0.0
    %833 = vmatpush2.msra.mxu0 0.0
    %834 = vmatprep.subr.mxu0 0.0
    %835 = vmatpush2.msra.mxu0 0.0
    %836 = vmatprep.subr.mxu0 0.0
    %837 = vmatpush2.msra.mxu0 0.0
    %838 = vmatprep.subr.mxu0 0.0
    %839 = vmatpush2.msra.mxu0 0.0
    %840 = vmatprep.subr.mxu0 0.0
    %841 = vmatpush2.msra.mxu0 0.0
    %842 = vmatprep.subr.mxu0 0.0
    %843 = vmatpush2.msra.mxu0 0.0
    %844 = vmatprep.subr.mxu0 0.0
    %845 = vmatpush2.msra.mxu0 0.0
    %846 = vmatprep.subr.mxu0 0.0
    %847 = vmatpush2.msra.mxu0 0.0
    %848 = vmatprep.subr.mxu0 0.0
    %849 = vmatpush2.msra.mxu0 0.0
    %850 = vmatprep.subr.mxu0 0.0
    %851 = vmatpush2.msra.mxu0 0.0
    %852 = vmatprep.subr.mxu0 0.0
    %853 = vmatpush2.msra.mxu0 0.0
    %854 = vmatprep.subr.mxu0 0.0
    %855 = vmatpush2.msra.mxu0 0.0
    %856 = vmatprep.mubr.f32.mxu0 0.0
    %857 = vmatmul.mubr.f32.gmra.mxu0 %v790
    %v858 = vpop.f32.mrf.mxu0
    %v859 = vadd.f32 0.0, %v858
    %v860 = vpop.f32.mrf.mxu0
    %861 = vdwg.mxu0
    %v863 = vsel %vm198, %v783, 0
    %v866 = vsel %vm198, %v859, 0
    %868 = vmatprep.subr.mxu0 0.0
    %869 = vmatpush1.msra.mxu0 0.0
    %870 = vmatprep.subr.mxu0 0.0
    %871 = vmatpush1.msra.mxu0 0.0
    %872 = vmatprep.subr.mxu0 0.0
    %873 = vmatpush1.msra.mxu0 0.0
    %874 = vmatprep.subr.mxu0 0.0
    %875 = vmatpush1.msra.mxu0 0.0
    %876 = vmatprep.subr.mxu0 0.0
    %877 = vmatpush1.msra.mxu0 0.0
    %878 = vmatprep.subr.mxu0 0.0
    %879 = vmatpush1.msra.mxu0 0.0
    %880 = vmatprep.subr.mxu0 0.0
    %881 = vmatpush1.msra.mxu0 0.0
    %882 = vmatprep.subr.mxu0 0.0
    %883 = vmatpush1.msra.mxu0 0.0
    %884 = vmatprep.subr.mxu0 0.0
    %885 = vmatpush1.msra.mxu0 0.0
    %886 = vmatprep.subr.mxu0 0.0
    %887 = vmatpush1.msra.mxu0 0.0
    %888 = vmatprep.subr.mxu0 0.0
    %889 = vmatpush1.msra.mxu0 0.0
    %890 = vmatprep.subr.mxu0 0.0
    %891 = vmatpush1.msra.mxu0 0.0
    %892 = vmatprep.subr.mxu0 0.0
    %893 = vmatpush1.msra.mxu0 0.0
    %894 = vmatprep.subr.mxu0 0.0
    %895 = vmatpush1.msra.mxu0 0.0
    %896 = vmatprep.subr.mxu0 0.0
    %897 = vmatpush1.msra.mxu0 0.0
    %898 = vmatprep.subr.mxu0 0.0
    %899 = vmatpush1.msra.mxu0 %v192
    %900 = vmatprep.subr.mxu0 0.0
    %901 = vmatpush2.msra.mxu0 0.0
    %902 = vmatprep.subr.mxu0 0.0
    %903 = vmatpush2.msra.mxu0 0.0
    %904 = vmatprep.subr.mxu0 0.0
    %905 = vmatpush2.msra.mxu0 0.0
    %906 = vmatprep.subr.mxu0 0.0
    %907 = vmatpush2.msra.mxu0 0.0
    %908 = vmatprep.subr.mxu0 0.0
    %909 = vmatpush2.msra.mxu0 0.0
    %910 = vmatprep.subr.mxu0 0.0
    %911 = vmatpush2.msra.mxu0 0.0
    %912 = vmatprep.subr.mxu0 0.0
    %913 = vmatpush2.msra.mxu0 0.0
    %914 = vmatprep.subr.mxu0 0.0
    %915 = vmatpush2.msra.mxu0 0.0
    %916 = vmatprep.subr.mxu0 0.0
    %917 = vmatpush2.msra.mxu0 0.0
    %918 = vmatprep.subr.mxu0 0.0
    %919 = vmatpush2.msra.mxu0 0.0
    %920 = vmatprep.subr.mxu0 0.0
    %921 = vmatpush2.msra.mxu0 0.0
    %922 = vmatprep.subr.mxu0 0.0
    %923 = vmatpush2.msra.mxu0 0.0
    %924 = vmatprep.subr.mxu0 0.0
    %925 = vmatpush2.msra.mxu0 0.0
    %926 = vmatprep.subr.mxu0 0.0
    %927 = vmatpush2.msra.mxu0 0.0
    %928 = vmatprep.subr.mxu0 0.0
    %929 = vmatpush2.msra.mxu0 0.0
    %930 = vmatprep.subr.mxu0 0.0
    %931 = vmatpush2.msra.mxu0 0.0
    %932 = vmatprep.mubr.f32.mxu0 0.0
    %933 = vmatmul.mubr.f32.gmra.mxu0 %v863
    %v934 = vpop.f32.mrf.mxu0
    %v935 = vadd.f32 0.0, %v934
    %v936 = vpop.f32.mrf.mxu0
    %937 = vmatprep.mubr.f32.mxu0 0.0
    %938 = vmatmul.mubr.f32.gmra.mxu0 %v866
    %v939 = vpop.f32.mrf.mxu0
    %v940 = vadd.f32 0.0, %v939
    %v941 = vpop.f32.mrf.mxu0
    %942 = vdwg.mxu0
    %v944 = vsel %vm198, %v449, 0
    %v947 = vsel %vm198, %v525, 0
    %949 = vmatprep.subr.mxu0 0.0
    %950 = vmatpush1.msra.mxu0 0.0
    %951 = vmatprep.subr.mxu0 0.0
    %952 = vmatpush1.msra.mxu0 0.0
    %953 = vmatprep.subr.mxu0 0.0
    %954 = vmatpush1.msra.mxu0 0.0
    %955 = vmatprep.subr.mxu0 0.0
    %956 = vmatpush1.msra.mxu0 0.0
    %957 = vmatprep.subr.mxu0 0.0
    %958 = vmatpush1.msra.mxu0 0.0
    %959 = vmatprep.subr.mxu0 0.0
    %960 = vmatpush1.msra.mxu0 0.0
    %961 = vmatprep.subr.mxu0 0.0
    %962 = vmatpush1.msra.mxu0 0.0
    %963 = vmatprep.subr.mxu0 0.0
    %964 = vmatpush1.msra.mxu0 0.0
    %965 = vmatprep.subr.mxu0 0.0
    %966 = vmatpush1.msra.mxu0 0.0
    %967 = vmatprep.subr.mxu0 0.0
    %968 = vmatpush1.msra.mxu0 0.0
    %969 = vmatprep.subr.mxu0 0.0
    %970 = vmatpush1.msra.mxu0 0.0
    %971 = vmatprep.subr.mxu0 0.0
    %972 = vmatpush1.msra.mxu0 0.0
    %973 = vmatprep.subr.mxu0 0.0
    %974 = vmatpush1.msra.mxu0 0.0
    %975 = vmatprep.subr.mxu0 0.0
    %976 = vmatpush1.msra.mxu0 0.0
    %977 = vmatprep.subr.mxu0 0.0
    %978 = vmatpush1.msra.mxu0 0.0
    %979 = vmatprep.subr.mxu0 0.0
    %980 = vmatpush1.msra.mxu0 %v191
    %981 = vmatprep.subr.mxu0 0.0
    %982 = vmatpush2.msra.mxu0 0.0
    %983 = vmatprep.subr.mxu0 0.0
    %984 = vmatpush2.msra.mxu0 0.0
    %985 = vmatprep.subr.mxu0 0.0
    %986 = vmatpush2.msra.mxu0 0.0
    %987 = vmatprep.subr.mxu0 0.0
    %988 = vmatpush2.msra.mxu0 0.0
    %989 = vmatprep.subr.mxu0 0.0
    %990 = vmatpush2.msra.mxu0 0.0
    %991 = vmatprep.subr.mxu0 0.0
    %992 = vmatpush2.msra.mxu0 0.0
    %993 = vmatprep.subr.mxu0 0.0
    %994 = vmatpush2.msra.mxu0 0.0
    %995 = vmatprep.subr.mxu0 0.0
    %996 = vmatpush2.msra.mxu0 0.0
    %997 = vmatprep.subr.mxu0 0.0
    %998 = vmatpush2.msra.mxu0 0.0
    %999 = vmatprep.subr.mxu0 0.0
    %1000 = vmatpush2.msra.mxu0 0.0
    %1001 = vmatprep.subr.mxu0 0.0
    %1002 = vmatpush2.msra.mxu0 0.0
    %1003 = vmatprep.subr.mxu0 0.0
    %1004 = vmatpush2.msra.mxu0 0.0
    %1005 = vmatprep.subr.mxu0 0.0
    %1006 = vmatpush2.msra.mxu0 0.0
    %1007 = vmatprep.subr.mxu0 0.0
    %1008 = vmatpush2.msra.mxu0 0.0
    %1009 = vmatprep.subr.mxu0 0.0
    %1010 = vmatpush2.msra.mxu0 0.0
    %1011 = vmatprep.subr.mxu0 0.0
    %1012 = vmatpush2.msra.mxu0 0.0
    %1013 = vmatprep.mubr.f32.mxu0 0.0
    %1014 = vmatmul.mubr.f32.gmra.mxu0 %v944
    %v1015 = vpop.f32.mrf.mxu0
    %v1016 = vadd.f32 %v935, %v1015
    %v1017 = vpop.f32.mrf.mxu0
    %1018 = vmatprep.mubr.f32.mxu0 0.0
    %1019 = vmatmul.mubr.f32.gmra.mxu0 %v947
    %v1020 = vpop.f32.mrf.mxu0
    %v1021 = vadd.f32 %v940, %v1020
    %v1022 = vpop.f32.mrf.mxu0
    %1023 = vdwg.mxu0
    %1024 = vrot.lane.b32.xlu0 %v177, 112
    %v1025 = vpop.permute.xlu0 %1024
    %1026 = vrot.lane.b32.xlu0 %v177, 80
    %v1027 = vpop.permute.xlu0 %1026
    %v1028 = vsel %vm198, %v1025, 0
    %v1030 = vsel %vm198, %v1027, 0
    %1032 = vmatprep.subr.mxu0 0.0
    %1033 = vmatpush1.xpose.msra.mxu0 0.0
    %1034 = vmatprep.subr.mxu0 0.0
    %1035 = vmatpush1.xpose.msra.mxu0 0.0
    %1036 = vmatprep.subr.mxu0 0.0
    %1037 = vmatpush1.xpose.msra.mxu0 0.0
    %1038 = vmatprep.subr.mxu0 0.0
    %1039 = vmatpush1.xpose.msra.mxu0 0.0
    %1040 = vmatprep.subr.mxu0 0.0
    %1041 = vmatpush1.xpose.msra.mxu0 0.0
    %1042 = vmatprep.subr.mxu0 0.0
    %1043 = vmatpush1.xpose.msra.mxu0 0.0
    %1044 = vmatprep.subr.mxu0 0.0
    %1045 = vmatpush1.xpose.msra.mxu0 0.0
    %1046 = vmatprep.subr.mxu0 0.0
    %1047 = vmatpush1.xpose.msra.mxu0 0.0
    %1048 = vmatprep.subr.mxu0 0.0
    %1049 = vmatpush1.xpose.msra.mxu0 0.0
    %1050 = vmatprep.subr.mxu0 0.0
    %1051 = vmatpush1.xpose.msra.mxu0 0.0
    %1052 = vmatprep.subr.mxu0 0.0
    %1053 = vmatpush1.xpose.msra.mxu0 0.0
    %1054 = vmatprep.subr.mxu0 0.0
    %1055 = vmatpush1.xpose.msra.mxu0 0.0
    %1056 = vmatprep.subr.mxu0 0.0
    %1057 = vmatpush1.xpose.msra.mxu0 0.0
    %1058 = vmatprep.subr.mxu0 0.0
    %1059 = vmatpush1.xpose.msra.mxu0 0.0
    %1060 = vmatprep.subr.mxu0 0.0
    %1061 = vmatpush1.xpose.msra.mxu0 0.0
    %1062 = vmatprep.subr.mxu0 0.0
    %1063 = vmatpush1.xpose.msra.mxu0 %v1030
    %1064 = vmatprep.subr.mxu0 0.0
    %1065 = vmatpush2.xpose.msra.mxu0 0.0
    %1066 = vmatprep.subr.mxu0 0.0
    %1067 = vmatpush2.xpose.msra.mxu0 0.0
    %1068 = vmatprep.subr.mxu0 0.0
    %1069 = vmatpush2.xpose.msra.mxu0 0.0
    %1070 = vmatprep.subr.mxu0 0.0
    %1071 = vmatpush2.xpose.msra.mxu0 0.0
    %1072 = vmatprep.subr.mxu0 0.0
    %1073 = vmatpush2.xpose.msra.mxu0 0.0
    %1074 = vmatprep.subr.mxu0 0.0
    %1075 = vmatpush2.xpose.msra.mxu0 0.0
    %1076 = vmatprep.subr.mxu0 0.0
    %1077 = vmatpush2.xpose.msra.mxu0 0.0
    %1078 = vmatprep.subr.mxu0 0.0
    %1079 = vmatpush2.xpose.msra.mxu0 0.0
    %1080 = vmatprep.subr.mxu0 0.0
    %1081 = vmatpush2.xpose.msra.mxu0 0.0
    %1082 = vmatprep.subr.mxu0 0.0
    %1083 = vmatpush2.xpose.msra.mxu0 0.0
    %1084 = vmatprep.subr.mxu0 0.0
    %1085 = vmatpush2.xpose.msra.mxu0 0.0
    %1086 = vmatprep.subr.mxu0 0.0
    %1087 = vmatpush2.xpose.msra.mxu0 0.0
    %1088 = vmatprep.subr.mxu0 0.0
    %1089 = vmatpush2.xpose.msra.mxu0 0.0
    %1090 = vmatprep.subr.mxu0 0.0
    %1091 = vmatpush2.xpose.msra.mxu0 0.0
    %1092 = vmatprep.subr.mxu0 0.0
    %1093 = vmatpush2.xpose.msra.mxu0 0.0
    %1094 = vmatprep.subr.mxu0 0.0
    %1095 = vmatpush2.xpose.msra.mxu0 0.0
    %1096 = vmatprep.mubr.f32.mxu0 0.0
    %1097 = vmatmul.mubr.f32.gmra.mxu0 %v1028
    %v1098 = vpop.f32.mrf.mxu0
    %v1099 = vadd.f32 0.0, %v1098
    %v1100 = vpop.f32.mrf.mxu0
    %1101 = vdwg.mxu0
    %1102 = vrot.lane.b32.xlu0 %v182, 112
    %v1103 = vpop.permute.xlu0 %1102
    %1104 = vrot.lane.b32.xlu0 %v182, 80
    %v1105 = vpop.permute.xlu0 %1104
    %v1106 = vsel %vm198, %v1103, 0
    %v1108 = vsel %vm198, %v1105, 0
    %1110 = vmatprep.subr.mxu0 0.0
    %1111 = vmatpush1.xpose.msra.mxu0 0.0
    %1112 = vmatprep.subr.mxu0 0.0
    %1113 = vmatpush1.xpose.msra.mxu0 0.0
    %1114 = vmatprep.subr.mxu0 0.0
    %1115 = vmatpush1.xpose.msra.mxu0 0.0
    %1116 = vmatprep.subr.mxu0 0.0
    %1117 = vmatpush1.xpose.msra.mxu0 0.0
    %1118 = vmatprep.subr.mxu0 0.0
    %1119 = vmatpush1.xpose.msra.mxu0 0.0
    %1120 = vmatprep.subr.mxu0 0.0
    %1121 = vmatpush1.xpose.msra.mxu0 0.0
    %1122 = vmatprep.subr.mxu0 0.0
    %1123 = vmatpush1.xpose.msra.mxu0 0.0
    %1124 = vmatprep.subr.mxu0 0.0
    %1125 = vmatpush1.xpose.msra.mxu0 0.0
    %1126 = vmatprep.subr.mxu0 0.0
    %1127 = vmatpush1.xpose.msra.mxu0 0.0
    %1128 = vmatprep.subr.mxu0 0.0
    %1129 = vmatpush1.xpose.msra.mxu0 0.0
    %1130 = vmatprep.subr.mxu0 0.0
    %1131 = vmatpush1.xpose.msra.mxu0 0.0
    %1132 = vmatprep.subr.mxu0 0.0
    %1133 = vmatpush1.xpose.msra.mxu0 0.0
    %1134 = vmatprep.subr.mxu0 0.0
    %1135 = vmatpush1.xpose.msra.mxu0 0.0
    %1136 = vmatprep.subr.mxu0 0.0
    %1137 = vmatpush1.xpose.msra.mxu0 0.0
    %1138 = vmatprep.subr.mxu0 0.0
    %1139 = vmatpush1.xpose.msra.mxu0 0.0
    %1140 = vmatprep.subr.mxu0 0.0
    %1141 = vmatpush1.xpose.msra.mxu0 %v1108
    %1142 = vmatprep.subr.mxu0 0.0
    %1143 = vmatpush2.xpose.msra.mxu0 0.0
    %1144 = vmatprep.subr.mxu0 0.0
    %1145 = vmatpush2.xpose.msra.mxu0 0.0
    %1146 = vmatprep.subr.mxu0 0.0
    %1147 = vmatpush2.xpose.msra.mxu0 0.0
    %1148 = vmatprep.subr.mxu0 0.0
    %1149 = vmatpush2.xpose.msra.mxu0 0.0
    %1150 = vmatprep.subr.mxu0 0.0
    %1151 = vmatpush2.xpose.msra.mxu0 0.0
    %1152 = vmatprep.subr.mxu0 0.0
    %1153 = vmatpush2.xpose.msra.mxu0 0.0
    %1154 = vmatprep.subr.mxu0 0.0
    %1155 = vmatpush2.xpose.msra.mxu0 0.0
    %1156 = vmatprep.subr.mxu0 0.0
    %1157 = vmatpush2.xpose.msra.mxu0 0.0
    %1158 = vmatprep.subr.mxu0 0.0
    %1159 = vmatpush2.xpose.msra.mxu0 0.0
    %1160 = vmatprep.subr.mxu0 0.0
    %1161 = vmatpush2.xpose.msra.mxu0 0.0
    %1162 = vmatprep.subr.mxu0 0.0
    %1163 = vmatpush2.xpose.msra.mxu0 0.0
    %1164 = vmatprep.subr.mxu0 0.0
    %1165 = vmatpush2.xpose.msra.mxu0 0.0
    %1166 = vmatprep.subr.mxu0 0.0
    %1167 = vmatpush2.xpose.msra.mxu0 0.0
    %1168 = vmatprep.subr.mxu0 0.0
    %1169 = vmatpush2.xpose.msra.mxu0 0.0
    %1170 = vmatprep.subr.mxu0 0.0
    %1171 = vmatpush2.xpose.msra.mxu0 0.0
    %1172 = vmatprep.subr.mxu0 0.0
    %1173 = vmatpush2.xpose.msra.mxu0 0.0
    %1174 = vmatprep.mubr.f32.mxu0 0.0
    %1175 = vmatmul.mubr.f32.gmra.mxu0 %v1106
    %v1176 = vpop.f32.mrf.mxu0
    %v1177 = vadd.f32 0.0, %v1176
    %v1178 = vpop.f32.mrf.mxu0
    %1179 = vdwg.mxu0
    %v1180 = vmul.f32 %v1099, 0.35355338
    %v1181 = vmul.f32 %v1177, 0.35355338
    %v1182 = vadd.f32 %v1180, %v190
    %v1183 = vadd.f32 %v1181, %v190
    %v1184 = vsel %vm198, %v1182, -inf
    %1185 = vmax.xlane.f32.xlu0 %v1184
    %v1186 = vpop.xlane.xlu0 %1185
    %v1187 = vsel %vm198, %v1183, -inf
    %1188 = vmax.xlane.f32.xlu0 %v1187
    %v1189 = vpop.xlane.xlu0 %1188
    %v1190 = vsub.f32 %v1182, %v1186
    %v1191 = vsub.f32 %v1183, %v1189
    %v1192 = vmul.f32 %v1190, 1.442695
    %v1193 = vpow.pop %v1192
    %v1194 = vmul.f32 %v1191, 1.442695
    %v1195 = vpow.pop %v1194
    %v1196 = vsel %vm198, %v1193, 0.0
    %1197 = vadd.xlane.f32.xlu0 %v1196
    %v1198 = vpop.xlane.xlu0 %1197
    %v1199 = vsel %vm198, %v1195, 0.0
    %1200 = vadd.xlane.f32.xlu0 %v1199
    %v1201 = vpop.xlane.xlu0 %1200
    %v1202 = vrcp.pop %v1198
    %v1203 = vmul.f32 %v1193, %v1202
    %v1204 = vrcp.pop %v1201
    %v1205 = vmul.f32 %v1195, %v1204
    %1206 = vrot.lane.b32.xlu0 %v177, 48
    %v1207 = vpop.permute.xlu0 %1206
    %v1210 = vsel %vm198, %v1203, 0
    %1212 = vmatprep.subr.mxu0 0.0
    %1213 = vmatpush1.msra.mxu0 0.0
    %1214 = vmatprep.subr.mxu0 0.0
    %1215 = vmatpush1.msra.mxu0 0.0
    %1216 = vmatprep.subr.mxu0 0.0
    %1217 = vmatpush1.msra.mxu0 0.0
    %1218 = vmatprep.subr.mxu0 0.0
    %1219 = vmatpush1.msra.mxu0 0.0
    %1220 = vmatprep.subr.mxu0 0.0
    %1221 = vmatpush1.msra.mxu0 0.0
    %1222 = vmatprep.subr.mxu0 0.0
    %1223 = vmatpush1.msra.mxu0 0.0
    %1224 = vmatprep.subr.mxu0 0.0
    %1225 = vmatpush1.msra.mxu0 0.0
    %1226 = vmatprep.subr.mxu0 0.0
    %1227 = vmatpush1.msra.mxu0 0.0
    %1228 = vmatprep.subr.mxu0 0.0
    %1229 = vmatpush1.msra.mxu0 0.0
    %1230 = vmatprep.subr.mxu0 0.0
    %1231 = vmatpush1.msra.mxu0 0.0
    %1232 = vmatprep.subr.mxu0 0.0
    %1233 = vmatpush1.msra.mxu0 0.0
    %1234 = vmatprep.subr.mxu0 0.0
    %1235 = vmatpush1.msra.mxu0 0.0
    %1236 = vmatprep.subr.mxu0 0.0
    %1237 = vmatpush1.msra.mxu0 0.0
    %1238 = vmatprep.subr.mxu0 0.0
    %1239 = vmatpush1.msra.mxu0 0.0
    %1240 = vmatprep.subr.mxu0 0.0
    %1241 = vmatpush1.msra.mxu0 0.0
    %1242 = vmatprep.subr.mxu0 0.0
    %1243 = vmatpush1.msra.mxu0 %v1207
    %1244 = vmatprep.subr.mxu0 0.0
    %1245 = vmatpush2.msra.mxu0 0.0
    %1246 = vmatprep.subr.mxu0 0.0
    %1247 = vmatpush2.msra.mxu0 0.0
    %1248 = vmatprep.subr.mxu0 0.0
    %1249 = vmatpush2.msra.mxu0 0.0
    %1250 = vmatprep.subr.mxu0 0.0
    %1251 = vmatpush2.msra.mxu0 0.0
    %1252 = vmatprep.subr.mxu0 0.0
    %1253 = vmatpush2.msra.mxu0 0.0
    %1254 = vmatprep.subr.mxu0 0.0
    %1255 = vmatpush2.msra.mxu0 0.0
    %1256 = vmatprep.subr.mxu0 0.0
    %1257 = vmatpush2.msra.mxu0 0.0
    %1258 = vmatprep.subr.mxu0 0.0
    %1259 = vmatpush2.msra.mxu0 0.0
    %1260 = vmatprep.subr.mxu0 0.0
    %1261 = vmatpush2.msra.mxu0 0.0
    %1262 = vmatprep.subr.mxu0 0.0
    %1263 = vmatpush2.msra.mxu0 0.0
    %1264 = vmatprep.subr.mxu0 0.0
    %1265 = vmatpush2.msra.mxu0 0.0
    %1266 = vmatprep.subr.mxu0 0.0
    %1267 = vmatpush2.msra.mxu0 0.0
    %1268 = vmatprep.subr.mxu0 0.0
    %1269 = vmatpush2.msra.mxu0 0.0
    %1270 = vmatprep.subr.mxu0 0.0
    %1271 = vmatpush2.msra.mxu0 0.0
    %1272 = vmatprep.subr.mxu0 0.0
    %1273 = vmatpush2.msra.mxu0 0.0
    %1274 = vmatprep.subr.mxu0 0.0
    %1275 = vmatpush2.msra.mxu0 0.0
    %1276 = vmatprep.mubr.f32.mxu0 0.0
    %1277 = vmatmul.mubr.f32.gmra.mxu0 %v1210
    %v1278 = vpop.f32.mrf.mxu0
    %v1279 = vadd.f32 0.0, %v1278
    %v1280 = vpop.f32.mrf.mxu0
    %1281 = vdwg.mxu0
    %1282 = vrot.lane.b32.xlu0 %v182, 48
    %v1283 = vpop.permute.xlu0 %1282
    %v1286 = vsel %vm198, %v1205, 0
    %1288 = vmatprep.subr.mxu0 0.0
    %1289 = vmatpush1.msra.mxu0 0.0
    %1290 = vmatprep.subr.mxu0 0.0
    %1291 = vmatpush1.msra.mxu0 0.0
    %1292 = vmatprep.subr.mxu0 0.0
    %1293 = vmatpush1.msra.mxu0 0.0
    %1294 = vmatprep.subr.mxu0 0.0
    %1295 = vmatpush1.msra.mxu0 0.0
    %1296 = vmatprep.subr.mxu0 0.0
    %1297 = vmatpush1.msra.mxu0 0.0
    %1298 = vmatprep.subr.mxu0 0.0
    %1299 = vmatpush1.msra.mxu0 0.0
    %1300 = vmatprep.subr.mxu0 0.0
    %1301 = vmatpush1.msra.mxu0 0.0
    %1302 = vmatprep.subr.mxu0 0.0
    %1303 = vmatpush1.msra.mxu0 0.0
    %1304 = vmatprep.subr.mxu0 0.0
    %1305 = vmatpush1.msra.mxu0 0.0
    %1306 = vmatprep.subr.mxu0 0.0
    %1307 = vmatpush1.msra.mxu0 0.0
    %1308 = vmatprep.subr.mxu0 0.0
    %1309 = vmatpush1.msra.mxu0 0.0
    %1310 = vmatprep.subr.mxu0 0.0
    %1311 = vmatpush1.msra.mxu0 0.0
    %1312 = vmatprep.subr.mxu0 0.0
    %1313 = vmatpush1.msra.mxu0 0.0
    %1314 = vmatprep.subr.mxu0 0.0
    %1315 = vmatpush1.msra.mxu0 0.0
    %1316 = vmatprep.subr.mxu0 0.0
    %1317 = vmatpush1.msra.mxu0 0.0
    %1318 = vmatprep.subr.mxu0 0.0
    %1319 = vmatpush1.msra.mxu0 %v1283
    %1320 = vmatprep.subr.mxu0 0.0
    %1321 = vmatpush2.msra.mxu0 0.0
    %1322 = vmatprep.subr.mxu0 0.0
    %1323 = vmatpush2.msra.mxu0 0.0
    %1324 = vmatprep.subr.mxu0 0.0
    %1325 = vmatpush2.msra.mxu0 0.0
    %1326 = vmatprep.subr.mxu0 0.0
    %1327 = vmatpush2.msra.mxu0 0.0
    %1328 = vmatprep.subr.mxu0 0.0
    %1329 = vmatpush2.msra.mxu0 0.0
    %1330 = vmatprep.subr.mxu0 0.0
    %1331 = vmatpush2.msra.mxu0 0.0
    %1332 = vmatprep.subr.mxu0 0.0
    %1333 = vmatpush2.msra.mxu0 0.0
    %1334 = vmatprep.subr.mxu0 0.0
    %1335 = vmatpush2.msra.mxu0 0.0
    %1336 = vmatprep.subr.mxu0 0.0
    %1337 = vmatpush2.msra.mxu0 0.0
    %1338 = vmatprep.subr.mxu0 0.0
    %1339 = vmatpush2.msra.mxu0 0.0
    %1340 = vmatprep.subr.mxu0 0.0
    %1341 = vmatpush2.msra.mxu0 0.0
    %1342 = vmatprep.subr.mxu0 0.0
    %1343 = vmatpush2.msra.mxu0 0.0
    %1344 = vmatprep.subr.mxu0 0.0
    %1345 = vmatpush2.msra.mxu0 0.0
    %1346 = vmatprep.subr.mxu0 0.0
    %1347 = vmatpush2.msra.mxu0 0.0
    %1348 = vmatprep.subr.mxu0 0.0
    %1349 = vmatpush2.msra.mxu0 0.0
    %1350 = vmatprep.subr.mxu0 0.0
    %1351 = vmatpush2.msra.mxu0 0.0
    %1352 = vmatprep.mubr.f32.mxu0 0.0
    %1353 = vmatmul.mubr.f32.gmra.mxu0 %v1286
    %v1354 = vpop.f32.mrf.mxu0
    %v1355 = vadd.f32 0.0, %v1354
    %v1356 = vpop.f32.mrf.mxu0
    %1357 = vdwg.mxu0
    %v1359 = vsel %vm198, %v1279, 0
    %v1362 = vsel %vm198, %v1355, 0
    %1364 = vmatprep.subr.mxu0 0.0
    %1365 = vmatpush1.msra.mxu0 0.0
    %1366 = vmatprep.subr.mxu0 0.0
    %1367 = vmatpush1.msra.mxu0 0.0
    %1368 = vmatprep.subr.mxu0 0.0
    %1369 = vmatpush1.msra.mxu0 0.0
    %1370 = vmatprep.subr.mxu0 0.0
    %1371 = vmatpush1.msra.mxu0 0.0
    %1372 = vmatprep.subr.mxu0 0.0
    %1373 = vmatpush1.msra.mxu0 0.0
    %1374 = vmatprep.subr.mxu0 0.0
    %1375 = vmatpush1.msra.mxu0 0.0
    %1376 = vmatprep.subr.mxu0 0.0
    %1377 = vmatpush1.msra.mxu0 0.0
    %1378 = vmatprep.subr.mxu0 0.0
    %1379 = vmatpush1.msra.mxu0 0.0
    %1380 = vmatprep.subr.mxu0 0.0
    %1381 = vmatpush1.msra.mxu0 0.0
    %1382 = vmatprep.subr.mxu0 0.0
    %1383 = vmatpush1.msra.mxu0 0.0
    %1384 = vmatprep.subr.mxu0 0.0
    %1385 = vmatpush1.msra.mxu0 0.0
    %1386 = vmatprep.subr.mxu0 0.0
    %1387 = vmatpush1.msra.mxu0 0.0
    %1388 = vmatprep.subr.mxu0 0.0
    %1389 = vmatpush1.msra.mxu0 0.0
    %1390 = vmatprep.subr.mxu0 0.0
    %1391 = vmatpush1.msra.mxu0 0.0
    %1392 = vmatprep.subr.mxu0 0.0
    %1393 = vmatpush1.msra.mxu0 0.0
    %1394 = vmatprep.subr.mxu0 0.0
    %1395 = vmatpush1.msra.mxu0 %v193
    %1396 = vmatprep.subr.mxu0 0.0
    %1397 = vmatpush2.msra.mxu0 0.0
    %1398 = vmatprep.subr.mxu0 0.0
    %1399 = vmatpush2.msra.mxu0 0.0
    %1400 = vmatprep.subr.mxu0 0.0
    %1401 = vmatpush2.msra.mxu0 0.0
    %1402 = vmatprep.subr.mxu0 0.0
    %1403 = vmatpush2.msra.mxu0 0.0
    %1404 = vmatprep.subr.mxu0 0.0
    %1405 = vmatpush2.msra.mxu0 0.0
    %1406 = vmatprep.subr.mxu0 0.0
    %1407 = vmatpush2.msra.mxu0 0.0
    %1408 = vmatprep.subr.mxu0 0.0
    %1409 = vmatpush2.msra.mxu0 0.0
    %1410 = vmatprep.subr.mxu0 0.0
    %1411 = vmatpush2.msra.mxu0 0.0
    %1412 = vmatprep.subr.mxu0 0.0
    %1413 = vmatpush2.msra.mxu0 0.0
    %1414 = vmatprep.subr.mxu0 0.0
    %1415 = vmatpush2.msra.mxu0 0.0
    %1416 = vmatprep.subr.mxu0 0.0
    %1417 = vmatpush2.msra.mxu0 0.0
    %1418 = vmatprep.subr.mxu0 0.0
    %1419 = vmatpush2.msra.mxu0 0.0
    %1420 = vmatprep.subr.mxu0 0.0
    %1421 = vmatpush2.msra.mxu0 0.0
    %1422 = vmatprep.subr.mxu0 0.0
    %1423 = vmatpush2.msra.mxu0 0.0
    %1424 = vmatprep.subr.mxu0 0.0
    %1425 = vmatpush2.msra.mxu0 0.0
    %1426 = vmatprep.subr.mxu0 0.0
    %1427 = vmatpush2.msra.mxu0 0.0
    %1428 = vmatprep.mubr.f32.mxu0 0.0
    %1429 = vmatmul.mubr.f32.gmra.mxu0 %v1359
    %v1430 = vpop.f32.mrf.mxu0
    %v1431 = vadd.f32 0.0, %v1430
    %v1432 = vpop.f32.mrf.mxu0
    %1433 = vmatprep.mubr.f32.mxu0 0.0
    %1434 = vmatmul.mubr.f32.gmra.mxu0 %v1362
    %v1435 = vpop.f32.mrf.mxu0
    %v1436 = vadd.f32 0.0, %v1435
    %v1437 = vpop.f32.mrf.mxu0
    %1438 = vdwg.mxu0
    %v1439 = vadd.f32 %v1016, %v1431
    %v1440 = vadd.f32 %v1021, %v1436
    %1441 = vrot.lane.b32.xlu0 %v177, 104
    %v1442 = vpop.permute.xlu0 %1441
    %1443 = vrot.lane.b32.xlu0 %v177, 72
    %v1444 = vpop.permute.xlu0 %1443
    %v1445 = vsel %vm198, %v1442, 0
    %v1447 = vsel %vm198, %v1444, 0
    %1449 = vmatprep.subr.mxu0 0.0
    %1450 = vmatpush1.xpose.msra.mxu0 0.0
    %1451 = vmatprep.subr.mxu0 0.0
    %1452 = vmatpush1.xpose.msra.mxu0 0.0
    %1453 = vmatprep.subr.mxu0 0.0
    %1454 = vmatpush1.xpose.msra.mxu0 0.0
    %1455 = vmatprep.subr.mxu0 0.0
    %1456 = vmatpush1.xpose.msra.mxu0 0.0
    %1457 = vmatprep.subr.mxu0 0.0
    %1458 = vmatpush1.xpose.msra.mxu0 0.0
    %1459 = vmatprep.subr.mxu0 0.0
    %1460 = vmatpush1.xpose.msra.mxu0 0.0
    %1461 = vmatprep.subr.mxu0 0.0
    %1462 = vmatpush1.xpose.msra.mxu0 0.0
    %1463 = vmatprep.subr.mxu0 0.0
    %1464 = vmatpush1.xpose.msra.mxu0 0.0
    %1465 = vmatprep.subr.mxu0 0.0
    %1466 = vmatpush1.xpose.msra.mxu0 0.0
    %1467 = vmatprep.subr.mxu0 0.0
    %1468 = vmatpush1.xpose.msra.mxu0 0.0
    %1469 = vmatprep.subr.mxu0 0.0
    %1470 = vmatpush1.xpose.msra.mxu0 0.0
    %1471 = vmatprep.subr.mxu0 0.0
    %1472 = vmatpush1.xpose.msra.mxu0 0.0
    %1473 = vmatprep.subr.mxu0 0.0
    %1474 = vmatpush1.xpose.msra.mxu0 0.0
    %1475 = vmatprep.subr.mxu0 0.0
    %1476 = vmatpush1.xpose.msra.mxu0 0.0
    %1477 = vmatprep.subr.mxu0 0.0
    %1478 = vmatpush1.xpose.msra.mxu0 0.0
    %1479 = vmatprep.subr.mxu0 0.0
    %1480 = vmatpush1.xpose.msra.mxu0 %v1447
    %1481 = vmatprep.subr.mxu0 0.0
    %1482 = vmatpush2.xpose.msra.mxu0 0.0
    %1483 = vmatprep.subr.mxu0 0.0
    %1484 = vmatpush2.xpose.msra.mxu0 0.0
    %1485 = vmatprep.subr.mxu0 0.0
    %1486 = vmatpush2.xpose.msra.mxu0 0.0
    %1487 = vmatprep.subr.mxu0 0.0
    %1488 = vmatpush2.xpose.msra.mxu0 0.0
    %1489 = vmatprep.subr.mxu0 0.0
    %1490 = vmatpush2.xpose.msra.mxu0 0.0
    %1491 = vmatprep.subr.mxu0 0.0
    %1492 = vmatpush2.xpose.msra.mxu0 0.0
    %1493 = vmatprep.subr.mxu0 0.0
    %1494 = vmatpush2.xpose.msra.mxu0 0.0
    %1495 = vmatprep.subr.mxu0 0.0
    %1496 = vmatpush2.xpose.msra.mxu0 0.0
    %1497 = vmatprep.subr.mxu0 0.0
    %1498 = vmatpush2.xpose.msra.mxu0 0.0
    %1499 = vmatprep.subr.mxu0 0.0
    %1500 = vmatpush2.xpose.msra.mxu0 0.0
    %1501 = vmatprep.subr.mxu0 0.0
    %1502 = vmatpush2.xpose.msra.mxu0 0.0
    %1503 = vmatprep.subr.mxu0 0.0
    %1504 = vmatpush2.xpose.msra.mxu0 0.0
    %1505 = vmatprep.subr.mxu0 0.0
    %1506 = vmatpush2.xpose.msra.mxu0 0.0
    %1507 = vmatprep.subr.mxu0 0.0
    %1508 = vmatpush2.xpose.msra.mxu0 0.0
    %1509 = vmatprep.subr.mxu0 0.0
    %1510 = vmatpush2.xpose.msra.mxu0 0.0
    %1511 = vmatprep.subr.mxu0 0.0
    %1512 = vmatpush2.xpose.msra.mxu0 0.0
    %1513 = vmatprep.mubr.f32.mxu0 0.0
    %1514 = vmatmul.mubr.f32.gmra.mxu0 %v1445
    %v1515 = vpop.f32.mrf.mxu0
    %v1516 = vadd.f32 0.0, %v1515
    %v1517 = vpop.f32.mrf.mxu0
    %1518 = vdwg.mxu0
    %1519 = vrot.lane.b32.xlu0 %v182, 104
    %v1520 = vpop.permute.xlu0 %1519
    %1521 = vrot.lane.b32.xlu0 %v182, 72
    %v1522 = vpop.permute.xlu0 %1521
    %v1523 = vsel %vm198, %v1520, 0
    %v1525 = vsel %vm198, %v1522, 0
    %1527 = vmatprep.subr.mxu0 0.0
    %1528 = vmatpush1.xpose.msra.mxu0 0.0
    %1529 = vmatprep.subr.mxu0 0.0
    %1530 = vmatpush1.xpose.msra.mxu0 0.0
    %1531 = vmatprep.subr.mxu0 0.0
    %1532 = vmatpush1.xpose.msra.mxu0 0.0
    %1533 = vmatprep.subr.mxu0 0.0
    %1534 = vmatpush1.xpose.msra.mxu0 0.0
    %1535 = vmatprep.subr.mxu0 0.0
    %1536 = vmatpush1.xpose.msra.mxu0 0.0
    %1537 = vmatprep.subr.mxu0 0.0
    %1538 = vmatpush1.xpose.msra.mxu0 0.0
    %1539 = vmatprep.subr.mxu0 0.0
    %1540 = vmatpush1.xpose.msra.mxu0 0.0
    %1541 = vmatprep.subr.mxu0 0.0
    %1542 = vmatpush1.xpose.msra.mxu0 0.0
    %1543 = vmatprep.subr.mxu0 0.0
    %1544 = vmatpush1.xpose.msra.mxu0 0.0
    %1545 = vmatprep.subr.mxu0 0.0
    %1546 = vmatpush1.xpose.msra.mxu0 0.0
    %1547 = vmatprep.subr.mxu0 0.0
    %1548 = vmatpush1.xpose.msra.mxu0 0.0
    %1549 = vmatprep.subr.mxu0 0.0
    %1550 = vmatpush1.xpose.msra.mxu0 0.0
    %1551 = vmatprep.subr.mxu0 0.0
    %1552 = vmatpush1.xpose.msra.mxu0 0.0
    %1553 = vmatprep.subr.mxu0 0.0
    %1554 = vmatpush1.xpose.msra.mxu0 0.0
    %1555 = vmatprep.subr.mxu0 0.0
    %1556 = vmatpush1.xpose.msra.mxu0 0.0
    %1557 = vmatprep.subr.mxu0 0.0
    %1558 = vmatpush1.xpose.msra.mxu0 %v1525
    %1559 = vmatprep.subr.mxu0 0.0
    %1560 = vmatpush2.xpose.msra.mxu0 0.0
    %1561 = vmatprep.subr.mxu0 0.0
    %1562 = vmatpush2.xpose.msra.mxu0 0.0
    %1563 = vmatprep.subr.mxu0 0.0
    %1564 = vmatpush2.xpose.msra.mxu0 0.0
    %1565 = vmatprep.subr.mxu0 0.0
    %1566 = vmatpush2.xpose.msra.mxu0 0.0
    %1567 = vmatprep.subr.mxu0 0.0
    %1568 = vmatpush2.xpose.msra.mxu0 0.0
    %1569 = vmatprep.subr.mxu0 0.0
    %1570 = vmatpush2.xpose.msra.mxu0 0.0
    %1571 = vmatprep.subr.mxu0 0.0
    %1572 = vmatpush2.xpose.msra.mxu0 0.0
    %1573 = vmatprep.subr.mxu0 0.0
    %1574 = vmatpush2.xpose.msra.mxu0 0.0
    %1575 = vmatprep.subr.mxu0 0.0
    %1576 = vmatpush2.xpose.msra.mxu0 0.0
    %1577 = vmatprep.subr.mxu0 0.0
    %1578 = vmatpush2.xpose.msra.mxu0 0.0
    %1579 = vmatprep.subr.mxu0 0.0
    %1580 = vmatpush2.xpose.msra.mxu0 0.0
    %1581 = vmatprep.subr.mxu0 0.0
    %1582 = vmatpush2.xpose.msra.mxu0 0.0
    %1583 = vmatprep.subr.mxu0 0.0
    %1584 = vmatpush2.xpose.msra.mxu0 0.0
    %1585 = vmatprep.subr.mxu0 0.0
    %1586 = vmatpush2.xpose.msra.mxu0 0.0
    %1587 = vmatprep.subr.mxu0 0.0
    %1588 = vmatpush2.xpose.msra.mxu0 0.0
    %1589 = vmatprep.subr.mxu0 0.0
    %1590 = vmatpush2.xpose.msra.mxu0 0.0
    %1591 = vmatprep.mubr.f32.mxu0 0.0
    %1592 = vmatmul.mubr.f32.gmra.mxu0 %v1523
    %v1593 = vpop.f32.mrf.mxu0
    %v1594 = vadd.f32 0.0, %v1593
    %v1595 = vpop.f32.mrf.mxu0
    %1596 = vdwg.mxu0
    %v1597 = vmul.f32 %v1516, 0.35355338
    %v1598 = vmul.f32 %v1594, 0.35355338
    %v1599 = vadd.f32 %v1597, %v190
    %v1600 = vadd.f32 %v1598, %v190
    %v1601 = vsel %vm198, %v1599, -inf
    %1602 = vmax.xlane.f32.xlu0 %v1601
    %v1603 = vpop.xlane.xlu0 %1602
    %v1604 = vsel %vm198, %v1600, -inf
    %1605 = vmax.xlane.f32.xlu0 %v1604
    %v1606 = vpop.xlane.xlu0 %1605
    %v1607 = vsub.f32 %v1599, %v1603
    %v1608 = vsub.f32 %v1600, %v1606
    %v1609 = vmul.f32 %v1607, 1.442695
    %v1610 = vpow.pop %v1609
    %v1611 = vmul.f32 %v1608, 1.442695
    %v1612 = vpow.pop %v1611
    %v1613 = vsel %vm198, %v1610, 0.0
    %1614 = vadd.xlane.f32.xlu0 %v1613
    %v1615 = vpop.xlane.xlu0 %1614
    %v1616 = vsel %vm198, %v1612, 0.0
    %1617 = vadd.xlane.f32.xlu0 %v1616
    %v1618 = vpop.xlane.xlu0 %1617
    %v1619 = vrcp.pop %v1615
    %v1620 = vmul.f32 %v1610, %v1619
    %v1621 = vrcp.pop %v1618
    %v1622 = vmul.f32 %v1612, %v1621
    %1623 = vrot.lane.b32.xlu0 %v177, 40
    %v1624 = vpop.permute.xlu0 %1623
    %v1627 = vsel %vm198, %v1620, 0
    %1629 = vmatprep.subr.mxu0 0.0
    %1630 = vmatpush1.msra.mxu0 0.0
    %1631 = vmatprep.subr.mxu0 0.0
    %1632 = vmatpush1.msra.mxu0 0.0
    %1633 = vmatprep.subr.mxu0 0.0
    %1634 = vmatpush1.msra.mxu0 0.0
    %1635 = vmatprep.subr.mxu0 0.0
    %1636 = vmatpush1.msra.mxu0 0.0
    %1637 = vmatprep.subr.mxu0 0.0
    %1638 = vmatpush1.msra.mxu0 0.0
    %1639 = vmatprep.subr.mxu0 0.0
    %1640 = vmatpush1.msra.mxu0 0.0
    %1641 = vmatprep.subr.mxu0 0.0
    %1642 = vmatpush1.msra.mxu0 0.0
    %1643 = vmatprep.subr.mxu0 0.0
    %1644 = vmatpush1.msra.mxu0 0.0
    %1645 = vmatprep.subr.mxu0 0.0
    %1646 = vmatpush1.msra.mxu0 0.0
    %1647 = vmatprep.subr.mxu0 0.0
    %1648 = vmatpush1.msra.mxu0 0.0
    %1649 = vmatprep.subr.mxu0 0.0
    %1650 = vmatpush1.msra.mxu0 0.0
    %1651 = vmatprep.subr.mxu0 0.0
    %1652 = vmatpush1.msra.mxu0 0.0
    %1653 = vmatprep.subr.mxu0 0.0
    %1654 = vmatpush1.msra.mxu0 0.0
    %1655 = vmatprep.subr.mxu0 0.0
    %1656 = vmatpush1.msra.mxu0 0.0
    %1657 = vmatprep.subr.mxu0 0.0
    %1658 = vmatpush1.msra.mxu0 0.0
    %1659 = vmatprep.subr.mxu0 0.0
    %1660 = vmatpush1.msra.mxu0 %v1624
    %1661 = vmatprep.subr.mxu0 0.0
    %1662 = vmatpush2.msra.mxu0 0.0
    %1663 = vmatprep.subr.mxu0 0.0
    %1664 = vmatpush2.msra.mxu0 0.0
    %1665 = vmatprep.subr.mxu0 0.0
    %1666 = vmatpush2.msra.mxu0 0.0
    %1667 = vmatprep.subr.mxu0 0.0
    %1668 = vmatpush2.msra.mxu0 0.0
    %1669 = vmatprep.subr.mxu0 0.0
    %1670 = vmatpush2.msra.mxu0 0.0
    %1671 = vmatprep.subr.mxu0 0.0
    %1672 = vmatpush2.msra.mxu0 0.0
    %1673 = vmatprep.subr.mxu0 0.0
    %1674 = vmatpush2.msra.mxu0 0.0
    %1675 = vmatprep.subr.mxu0 0.0
    %1676 = vmatpush2.msra.mxu0 0.0
    %1677 = vmatprep.subr.mxu0 0.0
    %1678 = vmatpush2.msra.mxu0 0.0
    %1679 = vmatprep.subr.mxu0 0.0
    %1680 = vmatpush2.msra.mxu0 0.0
    %1681 = vmatprep.subr.mxu0 0.0
    %1682 = vmatpush2.msra.mxu0 0.0
    %1683 = vmatprep.subr.mxu0 0.0
    %1684 = vmatpush2.msra.mxu0 0.0
    %1685 = vmatprep.subr.mxu0 0.0
    %1686 = vmatpush2.msra.mxu0 0.0
    %1687 = vmatprep.subr.mxu0 0.0
    %1688 = vmatpush2.msra.mxu0 0.0
    %1689 = vmatprep.subr.mxu0 0.0
    %1690 = vmatpush2.msra.mxu0 0.0
    %1691 = vmatprep.subr.mxu0 0.0
    %1692 = vmatpush2.msra.mxu0 0.0
    %1693 = vmatprep.mubr.f32.mxu0 0.0
    %1694 = vmatmul.mubr.f32.gmra.mxu0 %v1627
    %v1695 = vpop.f32.mrf.mxu0
    %v1696 = vadd.f32 0.0, %v1695
    %v1697 = vpop.f32.mrf.mxu0
    %1698 = vdwg.mxu0
    %1699 = vrot.lane.b32.xlu0 %v182, 40
    %v1700 = vpop.permute.xlu0 %1699
    %v1703 = vsel %vm198, %v1622, 0
    %1705 = vmatprep.subr.mxu0 0.0
    %1706 = vmatpush1.msra.mxu0 0.0
    %1707 = vmatprep.subr.mxu0 0.0
    %1708 = vmatpush1.msra.mxu0 0.0
    %1709 = vmatprep.subr.mxu0 0.0
    %1710 = vmatpush1.msra.mxu0 0.0
    %1711 = vmatprep.subr.mxu0 0.0
    %1712 = vmatpush1.msra.mxu0 0.0
    %1713 = vmatprep.subr.mxu0 0.0
    %1714 = vmatpush1.msra.mxu0 0.0
    %1715 = vmatprep.subr.mxu0 0.0
    %1716 = vmatpush1.msra.mxu0 0.0
    %1717 = vmatprep.subr.mxu0 0.0
    %1718 = vmatpush1.msra.mxu0 0.0
    %1719 = vmatprep.subr.mxu0 0.0
    %1720 = vmatpush1.msra.mxu0 0.0
    %1721 = vmatprep.subr.mxu0 0.0
    %1722 = vmatpush1.msra.mxu0 0.0
    %1723 = vmatprep.subr.mxu0 0.0
    %1724 = vmatpush1.msra.mxu0 0.0
    %1725 = vmatprep.subr.mxu0 0.0
    %1726 = vmatpush1.msra.mxu0 0.0
    %1727 = vmatprep.subr.mxu0 0.0
    %1728 = vmatpush1.msra.mxu0 0.0
    %1729 = vmatprep.subr.mxu0 0.0
    %1730 = vmatpush1.msra.mxu0 0.0
    %1731 = vmatprep.subr.mxu0 0.0
    %1732 = vmatpush1.msra.mxu0 0.0
    %1733 = vmatprep.subr.mxu0 0.0
    %1734 = vmatpush1.msra.mxu0 0.0
    %1735 = vmatprep.subr.mxu0 0.0
    %1736 = vmatpush1.msra.mxu0 %v1700
    %1737 = vmatprep.subr.mxu0 0.0
    %1738 = vmatpush2.msra.mxu0 0.0
    %1739 = vmatprep.subr.mxu0 0.0
    %1740 = vmatpush2.msra.mxu0 0.0
    %1741 = vmatprep.subr.mxu0 0.0
    %1742 = vmatpush2.msra.mxu0 0.0
    %1743 = vmatprep.subr.mxu0 0.0
    %1744 = vmatpush2.msra.mxu0 0.0
    %1745 = vmatprep.subr.mxu0 0.0
    %1746 = vmatpush2.msra.mxu0 0.0
    %1747 = vmatprep.subr.mxu0 0.0
    %1748 = vmatpush2.msra.mxu0 0.0
    %1749 = vmatprep.subr.mxu0 0.0
    %1750 = vmatpush2.msra.mxu0 0.0
    %1751 = vmatprep.subr.mxu0 0.0
    %1752 = vmatpush2.msra.mxu0 0.0
    %1753 = vmatprep.subr.mxu0 0.0
    %1754 = vmatpush2.msra.mxu0 0.0
    %1755 = vmatprep.subr.mxu0 0.0
    %1756 = vmatpush2.msra.mxu0 0.0
    %1757 = vmatprep.subr.mxu0 0.0
    %1758 = vmatpush2.msra.mxu0 0.0
    %1759 = vmatprep.subr.mxu0 0.0
    %1760 = vmatpush2.msra.mxu0 0.0
    %1761 = vmatprep.subr.mxu0 0.0
    %1762 = vmatpush2.msra.mxu0 0.0
    %1763 = vmatprep.subr.mxu0 0.0
    %1764 = vmatpush2.msra.mxu0 0.0
    %1765 = vmatprep.subr.mxu0 0.0
    %1766 = vmatpush2.msra.mxu0 0.0
    %1767 = vmatprep.subr.mxu0 0.0
    %1768 = vmatpush2.msra.mxu0 0.0
    %1769 = vmatprep.mubr.f32.mxu0 0.0
    %1770 = vmatmul.mubr.f32.gmra.mxu0 %v1703
    %v1771 = vpop.f32.mrf.mxu0
    %v1772 = vadd.f32 0.0, %v1771
    %v1773 = vpop.f32.mrf.mxu0
    %1774 = vdwg.mxu0
    %v1776 = vsel %vm198, %v1696, 0
    %v1779 = vsel %vm198, %v1772, 0
    %1781 = vmatprep.subr.mxu0 0.0
    %1782 = vmatpush1.msra.mxu0 0.0
    %1783 = vmatprep.subr.mxu0 0.0
    %1784 = vmatpush1.msra.mxu0 0.0
    %1785 = vmatprep.subr.mxu0 0.0
    %1786 = vmatpush1.msra.mxu0 0.0
    %1787 = vmatprep.subr.mxu0 0.0
    %1788 = vmatpush1.msra.mxu0 0.0
    %1789 = vmatprep.subr.mxu0 0.0
    %1790 = vmatpush1.msra.mxu0 0.0
    %1791 = vmatprep.subr.mxu0 0.0
    %1792 = vmatpush1.msra.mxu0 0.0
    %1793 = vmatprep.subr.mxu0 0.0
    %1794 = vmatpush1.msra.mxu0 0.0
    %1795 = vmatprep.subr.mxu0 0.0
    %1796 = vmatpush1.msra.mxu0 0.0
    %1797 = vmatprep.subr.mxu0 0.0
    %1798 = vmatpush1.msra.mxu0 0.0
    %1799 = vmatprep.subr.mxu0 0.0
    %1800 = vmatpush1.msra.mxu0 0.0
    %1801 = vmatprep.subr.mxu0 0.0
    %1802 = vmatpush1.msra.mxu0 0.0
    %1803 = vmatprep.subr.mxu0 0.0
    %1804 = vmatpush1.msra.mxu0 0.0
    %1805 = vmatprep.subr.mxu0 0.0
    %1806 = vmatpush1.msra.mxu0 0.0
    %1807 = vmatprep.subr.mxu0 0.0
    %1808 = vmatpush1.msra.mxu0 0.0
    %1809 = vmatprep.subr.mxu0 0.0
    %1810 = vmatpush1.msra.mxu0 0.0
    %1811 = vmatprep.subr.mxu0 0.0
    %1812 = vmatpush1.msra.mxu0 %v194
    %1813 = vmatprep.subr.mxu0 0.0
    %1814 = vmatpush2.msra.mxu0 0.0
    %1815 = vmatprep.subr.mxu0 0.0
    %1816 = vmatpush2.msra.mxu0 0.0
    %1817 = vmatprep.subr.mxu0 0.0
    %1818 = vmatpush2.msra.mxu0 0.0
    %1819 = vmatprep.subr.mxu0 0.0
    %1820 = vmatpush2.msra.mxu0 0.0
    %1821 = vmatprep.subr.mxu0 0.0
    %1822 = vmatpush2.msra.mxu0 0.0
    %1823 = vmatprep.subr.mxu0 0.0
    %1824 = vmatpush2.msra.mxu0 0.0
    %1825 = vmatprep.subr.mxu0 0.0
    %1826 = vmatpush2.msra.mxu0 0.0
    %1827 = vmatprep.subr.mxu0 0.0
    %1828 = vmatpush2.msra.mxu0 0.0
    %1829 = vmatprep.subr.mxu0 0.0
    %1830 = vmatpush2.msra.mxu0 0.0
    %1831 = vmatprep.subr.mxu0 0.0
    %1832 = vmatpush2.msra.mxu0 0.0
    %1833 = vmatprep.subr.mxu0 0.0
    %1834 = vmatpush2.msra.mxu0 0.0
    %1835 = vmatprep.subr.mxu0 0.0
    %1836 = vmatpush2.msra.mxu0 0.0
    %1837 = vmatprep.subr.mxu0 0.0
    %1838 = vmatpush2.msra.mxu0 0.0
    %1839 = vmatprep.subr.mxu0 0.0
    %1840 = vmatpush2.msra.mxu0 0.0
    %1841 = vmatprep.subr.mxu0 0.0
    %1842 = vmatpush2.msra.mxu0 0.0
    %1843 = vmatprep.subr.mxu0 0.0
    %1844 = vmatpush2.msra.mxu0 0.0
    %1845 = vmatprep.mubr.f32.mxu0 0.0
    %1846 = vmatmul.mubr.f32.gmra.mxu0 %v1776
    %v1847 = vpop.f32.mrf.mxu0
    %v1848 = vadd.f32 0.0, %v1847
    %v1849 = vpop.f32.mrf.mxu0
    %1850 = vmatprep.mubr.f32.mxu0 0.0
    %1851 = vmatmul.mubr.f32.gmra.mxu0 %v1779
    %v1852 = vpop.f32.mrf.mxu0
    %v1853 = vadd.f32 0.0, %v1852
    %v1854 = vpop.f32.mrf.mxu0
    %1855 = vdwg.mxu0
    %v1856 = vadd.f32 %v1439, %v1848
    %v1857 = vadd.f32 %v1440, %v1853
    %v1858 = vadd.f32 %v45, %v1856
    %v1859 = vadd.f32 %v46, %v1857
    %v1860 = vld [vmem:[%s6] sm:$0x1]
    %v1862 = vlaneseq
    %v1863 = vshrl.u32 %v1862, 7
    %v1864 = vsub.s32 0, %v1863
    %v1865 = vrot.slane %v1860, %v1864
    %v1867 = vadd.f32 %v1858, %v1865
    %v1868 = vadd.f32 %v1859, %v1865
    %v1869 = vld [vmem:[%s7] sm:$0x1]
    %v1870 = vld [vmem:[%s8] sm:$0x1]
    %v1871 = vsel %vm49, %v1867, 0.0
    %1872 = vadd.xlane.f32.xlu0 %v1871
    %v1873 = vpop.xlane.xlu0 %1872
    %v1874 = vsel %vm49, %v1868, 0.0
    %1875 = vadd.xlane.f32.xlu0 %v1874
    %v1876 = vpop.xlane.xlu0 %1875
    %v1877 = vmul.f32 %v1873, %v56
    %v1878 = vmul.f32 %v1876, %v56
    %v1879 = vsub.f32 %v1867, %v1877
    %v1880 = vsub.f32 %v1868, %v1878
    %v1881 = vmul.f32 %v1879, %v1879
    %v1882 = vmul.f32 %v1880, %v1880
    %v1883 = vsel %vm49, %v1881, 0.0
    %1884 = vadd.xlane.f32.xlu0 %v1883
    %v1885 = vpop.xlane.xlu0 %1884
    %v1886 = vsel %vm49, %v1882, 0.0
    %1887 = vadd.xlane.f32.xlu0 %v1886
    %v1888 = vpop.xlane.xlu0 %1887
    %v1889 = vmul.f32 %v1885, %v56
    %v1890 = vmul.f32 %v1888, %v56
    %v1891 = vadd.f32 %v1889, 1e-05
    %v1892 = vadd.f32 %v1890, 1e-05
    %v1893 = vrsqrt.pop %v1891
    %v1894 = vrsqrt.pop %v1892
    %v1895 = vmul.f32 %v1879, %v1893
    %v1896 = vmul.f32 %v1880, %v1894
    %v1898 = vlaneseq
    %v1899 = vshrl.u32 %v1898, 7
    %v1900 = vsub.s32 0, %v1899
    %v1901 = vrot.slane %v1869, %v1900
    %v1903 = vmul.f32 %v1895, %v1901
    %v1904 = vmul.f32 %v1896, %v1901
    %v1906 = vlaneseq
    %v1907 = vshrl.u32 %v1906, 7
    %v1908 = vsub.s32 0, %v1907
    %v1909 = vrot.slane %v1870, %v1908
    %v1911 = vadd.f32 %v1903, %v1909
    %v1912 = vadd.f32 %v1904, %v1909
    %v1913 = vld [vmem:[%s9] sm:$0xff]
    %v1914 = vld [vmem:[%s9 + $0x8] sm:$0xff]
    %v1915 = vld [vmem:[%s9 + $0x10] sm:$0xff]
    %v1916 = vld [vmem:[%s9 + $0x18] sm:$0xff]
    %v1917 = vld [vmem:[%s10] sm:$0x1]
    %v1919 = vlaneseq
    %v1920 = vshrl.u32 %v1919, 7
    %v1921 = vsub.s32 0, %v1920
    %v1922 = vrot.slane %v1917, %v1921
    %v1925 = vsel %vm49, %v1911, 0
    %v1928 = vsel %vm49, %v1912, 0
    %1930 = vmatprep.subr.mxu0 0.0
    %1931 = vmatpush1.msra.mxu0 0.0
    %1932 = vmatprep.subr.mxu0 0.0
    %1933 = vmatpush1.msra.mxu0 0.0
    %1934 = vmatprep.subr.mxu0 0.0
    %1935 = vmatpush1.msra.mxu0 0.0
    %1936 = vmatprep.subr.mxu0 0.0
    %1937 = vmatpush1.msra.mxu0 0.0
    %1938 = vmatprep.subr.mxu0 0.0
    %1939 = vmatpush1.msra.mxu0 0.0
    %1940 = vmatprep.subr.mxu0 0.0
    %1941 = vmatpush1.msra.mxu0 0.0
    %1942 = vmatprep.subr.mxu0 0.0
    %1943 = vmatpush1.msra.mxu0 0.0
    %1944 = vmatprep.subr.mxu0 0.0
    %1945 = vmatpush1.msra.mxu0 0.0
    %1946 = vmatprep.subr.mxu0 0.0
    %1947 = vmatpush1.msra.mxu0 0.0
    %1948 = vmatprep.subr.mxu0 0.0
    %1949 = vmatpush1.msra.mxu0 0.0
    %1950 = vmatprep.subr.mxu0 0.0
    %1951 = vmatpush1.msra.mxu0 0.0
    %1952 = vmatprep.subr.mxu0 0.0
    %1953 = vmatpush1.msra.mxu0 0.0
    %1954 = vmatprep.subr.mxu0 0.0
    %1955 = vmatpush1.msra.mxu0 %v1916
    %1956 = vmatprep.subr.mxu0 0.0
    %1957 = vmatpush1.msra.mxu0 %v1915
    %1958 = vmatprep.subr.mxu0 0.0
    %1959 = vmatpush1.msra.mxu0 %v1914
    %1960 = vmatprep.subr.mxu0 0.0
    %1961 = vmatpush1.msra.mxu0 %v1913
    %1962 = vmatprep.subr.mxu0 0.0
    %1963 = vmatpush2.msra.mxu0 0.0
    %1964 = vmatprep.subr.mxu0 0.0
    %1965 = vmatpush2.msra.mxu0 0.0
    %1966 = vmatprep.subr.mxu0 0.0
    %1967 = vmatpush2.msra.mxu0 0.0
    %1968 = vmatprep.subr.mxu0 0.0
    %1969 = vmatpush2.msra.mxu0 0.0
    %1970 = vmatprep.subr.mxu0 0.0
    %1971 = vmatpush2.msra.mxu0 0.0
    %1972 = vmatprep.subr.mxu0 0.0
    %1973 = vmatpush2.msra.mxu0 0.0
    %1974 = vmatprep.subr.mxu0 0.0
    %1975 = vmatpush2.msra.mxu0 0.0
    %1976 = vmatprep.subr.mxu0 0.0
    %1977 = vmatpush2.msra.mxu0 0.0
    %1978 = vmatprep.subr.mxu0 0.0
    %1979 = vmatpush2.msra.mxu0 0.0
    %1980 = vmatprep.subr.mxu0 0.0
    %1981 = vmatpush2.msra.mxu0 0.0
    %1982 = vmatprep.subr.mxu0 0.0
    %1983 = vmatpush2.msra.mxu0 0.0
    %1984 = vmatprep.subr.mxu0 0.0
    %1985 = vmatpush2.msra.mxu0 0.0
    %1986 = vmatprep.subr.mxu0 0.0
    %1987 = vmatpush2.msra.mxu0 0.0
    %1988 = vmatprep.subr.mxu0 0.0
    %1989 = vmatpush2.msra.mxu0 0.0
    %1990 = vmatprep.subr.mxu0 0.0
    %1991 = vmatpush2.msra.mxu0 0.0
    %1992 = vmatprep.subr.mxu0 0.0
    %1993 = vmatpush2.msra.mxu0 0.0
    %1994 = vmatprep.mubr.f32.mxu0 0.0
    %1995 = vmatmul.mubr.f32.gmra.mxu0 %v1925
    %v1996 = vpop.f32.mrf.mxu0
    %v1997 = vadd.f32 %v1922, %v1996
    %v1998 = vpop.f32.mrf.mxu0
    %1999 = vmatprep.mubr.f32.mxu0 0.0
    %2000 = vmatmul.mubr.f32.gmra.mxu0 %v1928
    %v2001 = vpop.f32.mrf.mxu0
    %v2002 = vadd.f32 %v1922, %v2001
    %v2003 = vpop.f32.mrf.mxu0
    %2004 = vdwg.mxu0
    %v2005 = vmul.f32 %v1997, 0.5
    %v2006 = vmul.f32 %v2002, 0.5
    %v2007 = vmul.f32 %v1997, 0.044715
    %v2008 = vmul.f32 %v2002, 0.044715
    %v2009 = vmul.f32 %v2007, %v1997
    %v2010 = vmul.f32 %v2008, %v2002
    %v2011 = vmul.f32 %v2009, %v1997
    %v2012 = vmul.f32 %v2010, %v2002
    %v2013 = vadd.f32 %v1997, %v2011
    %v2014 = vadd.f32 %v2002, %v2012
    %v2015 = vmul.f32 %v2013, 0.7978846
    %v2016 = vmul.f32 %v2014, 0.7978846
    %v2017 = vtanh.pop %v2015
    %v2018 = vtanh.pop %v2016
    %v2019 = vadd.f32 %v2017, 1.0
    %v2020 = vadd.f32 %v2018, 1.0
    %v2021 = vmul.f32 %v2005, %v2019
    %v2022 = vmul.f32 %v2006, %v2020
    %v2023 = vld [vmem:[%s11] sm:$0xff]
    %v2024 = vld [vmem:[%s11 + $0x8] sm:$0xff]
    %v2025 = vld [vmem:[%s11 + $0x10] sm:$0xff]
    %v2026 = vld [vmem:[%s11 + $0x18] sm:$0xff]
    %v2027 = vld [vmem:[%s11 + $0x20] sm:$0xff]
    %v2028 = vld [vmem:[%s11 + $0x28] sm:$0xff]
    %v2029 = vld [vmem:[%s11 + $0x30] sm:$0xff]
    %v2030 = vld [vmem:[%s11 + $0x38] sm:$0xff]
    %v2031 = vld [vmem:[%s11 + $0x40] sm:$0xff]
    %v2032 = vld [vmem:[%s11 + $0x48] sm:$0xff]
    %v2033 = vld [vmem:[%s11 + $0x50] sm:$0xff]
    %v2034 = vld [vmem:[%s11 + $0x58] sm:$0xff]
    %v2035 = vld [vmem:[%s11 + $0x60] sm:$0xff]
    %v2036 = vld [vmem:[%s11 + $0x68] sm:$0xff]
    %v2037 = vld [vmem:[%s11 + $0x70] sm:$0xff]
    %v2038 = vld [vmem:[%s11 + $0x78] sm:$0xff]
    %v2039 = vld [vmem:[%s12] sm:$0x1]
    %v2041 = vlaneseq
    %v2042 = vshrl.u32 %v2041, 7
    %v2043 = vsub.s32 0, %v2042
    %v2044 = vrot.slane %v2039, %v2043
    %2046 = vmatprep.subr.mxu0 0.0
    %2047 = vmatpush1.msra.mxu0 %v2038
    %2048 = vmatprep.subr.mxu0 0.0
    %2049 = vmatpush1.msra.mxu0 %v2037
    %2050 = vmatprep.subr.mxu0 0.0
    %2051 = vmatpush1.msra.mxu0 %v2036
    %2052 = vmatprep.subr.mxu0 0.0
    %2053 = vmatpush1.msra.mxu0 %v2035
    %2054 = vmatprep.subr.mxu0 0.0
    %2055 = vmatpush1.msra.mxu0 %v2034
    %2056 = vmatprep.subr.mxu0 0.0
    %2057 = vmatpush1.msra.mxu0 %v2033
    %2058 = vmatprep.subr.mxu0 0.0
    %2059 = vmatpush1.msra.mxu0 %v2032
    %2060 = vmatprep.subr.mxu0 0.0
    %2061 = vmatpush1.msra.mxu0 %v2031
    %2062 = vmatprep.subr.mxu0 0.0
    %2063 = vmatpush1.msra.mxu0 %v2030
    %2064 = vmatprep.subr.mxu0 0.0
    %2065 = vmatpush1.msra.mxu0 %v2029
    %2066 = vmatprep.subr.mxu0 0.0
    %2067 = vmatpush1.msra.mxu0 %v2028
    %2068 = vmatprep.subr.mxu0 0.0
    %2069 = vmatpush1.msra.mxu0 %v2027
    %2070 = vmatprep.subr.mxu0 0.0
    %2071 = vmatpush1.msra.mxu0 %v2026
    %2072 = vmatprep.subr.mxu0 0.0
    %2073 = vmatpush1.msra.mxu0 %v2025
    %2074 = vmatprep.subr.mxu0 0.0
    %2075 = vmatpush1.msra.mxu0 %v2024
    %2076 = vmatprep.subr.mxu0 0.0
    %2077 = vmatpush1.msra.mxu0 %v2023
    %2078 = vmatprep.subr.mxu0 0.0
    %2079 = vmatpush2.msra.mxu0 0.0
    %2080 = vmatprep.subr.mxu0 0.0
    %2081 = vmatpush2.msra.mxu0 0.0
    %2082 = vmatprep.subr.mxu0 0.0
    %2083 = vmatpush2.msra.mxu0 0.0
    %2084 = vmatprep.subr.mxu0 0.0
    %2085 = vmatpush2.msra.mxu0 0.0
    %2086 = vmatprep.subr.mxu0 0.0
    %2087 = vmatpush2.msra.mxu0 0.0
    %2088 = vmatprep.subr.mxu0 0.0
    %2089 = vmatpush2.msra.mxu0 0.0
    %2090 = vmatprep.subr.mxu0 0.0
    %2091 = vmatpush2.msra.mxu0 0.0
    %2092 = vmatprep.subr.mxu0 0.0
    %2093 = vmatpush2.msra.mxu0 0.0
    %2094 = vmatprep.subr.mxu0 0.0
    %2095 = vmatpush2.msra.mxu0 0.0
    %2096 = vmatprep.subr.mxu0 0.0
    %2097 = vmatpush2.msra.mxu0 0.0
    %2098 = vmatprep.subr.mxu0 0.0
    %2099 = vmatpush2.msra.mxu0 0.0
    %2100 = vmatprep.subr.mxu0 0.0
    %2101 = vmatpush2.msra.mxu0 0.0
    %2102 = vmatprep.subr.mxu0 0.0
    %2103 = vmatpush2.msra.mxu0 0.0
    %2104 = vmatprep.subr.mxu0 0.0
    %2105 = vmatpush2.msra.mxu0 0.0
    %2106 = vmatprep.subr.mxu0 0.0
    %2107 = vmatpush2.msra.mxu0 0.0
    %2108 = vmatprep.subr.mxu0 0.0
    %2109 = vmatpush2.msra.mxu0 0.0
    %2110 = vmatprep.mubr.f32.mxu0 0.0
    %2111 = vmatmul.mubr.f32.gmra.mxu0 %v2021
    %v2112 = vpop.f32.mrf.mxu0
    %v2113 = vadd.f32 %v2044, %v2112
    %v2114 = vpop.f32.mrf.mxu0
    %2115 = vmatprep.mubr.f32.mxu0 0.0
    %2116 = vmatmul.mubr.f32.gmra.mxu0 %v2022
    %v2117 = vpop.f32.mrf.mxu0
    %v2118 = vadd.f32 %v2044, %v2117
    %v2119 = vpop.f32.mrf.mxu0
    %2120 = vdwg.mxu0
    %v2121 = vadd.f32 %v1867, %v2113
    %v2122 = vadd.f32 %v1868, %v2118
    %2123 = vst.msk [vmem:[#allocation2] sm:$0xff] %vm49, %v2121
    %2124 = vst.msk [vmem:[#allocation2 + $0x8] sm:$0xff] %vm49, %v2122
    // Predicated region
    $region54: #{forward.1} parent=1 // pred_check
      _
    $region55: #{forward.1} parent=1 // pred_check_branch
      %2126 = sbr.rel (0) target = $region57
    $region56: #{forward.1} parent=1 // pred_region
      %s2128 = ssub.s32 256, 256
      %2129 = vsyncadd [#allocation3], %s2128
      %s2130 = sshll.u32 [#allocation2], 4
      %s2131 = int_to_ptr.vmem [resolvable:$true] %s2130
      %2136 = dma.vmem_to_hbm [thread:$0]  %s2131, 256, %s13, [#allocation3], 128, 128, 8
    $region57: #{forward.1} parent=1 // pred_fallthru
      _
    // Predicated region
    $region58: #{forward.1} parent=1 // pred_check
      _
    $region59: #{forward.1} parent=1 // pred_check_branch
      %2138 = sbr.rel (0) target = $region61
    $region60: #{forward.1} parent=1 // pred_region
      %2139 = dma.done [#allocation3], 256
    $region61: #{forward.1} parent=1 // pred_fallthru
      _
    %2140 = vsyncpa [#allocation3], 1

</llo_original>
